<compile_context>
chip_gen: v5e
topology: v5e:2x2
jax: 0.10.0
libtpu: 0.0.40
codegen_flags: <defaults>
</compile_context>

<pallas_src>
import jax
import jax.numpy as jnp
from jax import lax
from jax.experimental import pallas as pl
from jax.experimental.pallas import tpu as pltpu


def _round_up(v, m):
    return (v + m - 1) // m * m


def _vmem_capacity_bytes():
    """Physical VMEM of the local chip, with a conservative (v7x) fallback."""
    try:
        info = pltpu.get_tpu_info()
        for name in ("vmem_capacity_bytes", "vmem_bytes", "vmem_size_bytes"):
            v = getattr(info, name, None)
            if v:
                return int(v)
    except Exception:
        pass
    return 64 * 1024 * 1024


def _double_conv_kernel(x_hbm, w1_ref, t1_ref, w2_ref, t2_ref, out_ref,
                        xbuf, copy_sem):
    """Grid = (batch, output-row strip).

    x_hbm  : [N, Hp, Wp, Cpi]  (HBM, manual halo-strip DMA)
    w1_ref : [9, Cpi, Cpo]     conv1 weights (BN1 scale folded in), per-tap
    t1_ref : [1, Cpo] f32      folded BN1 shift (includes conv1 bias)
    w2_ref : [9, Cpo, Cpo]     conv2 weights (BN2 scale folded in), per-tap
    t2_ref : [1, Cpo] f32      folded BN2 shift
    out_ref: [th, W2p, Cpo]    output row strip
    xbuf   : [2, th+4, Wp, Cpi] double-buffered input line buffer (VMEM)
    copy_sem: DMA semaphores, one per buffer slot
    """
    th, w2p, cpo = out_ref.shape
    _, rows, wp, cpi = xbuf.shape          # rows = th + 4
    r1 = th + 2                            # conv1 output rows for this strip
    w1p = w2p + 8                          # 8-aligned conv1 width (<= wp - 2)

    n = pl.program_id(0)
    hs = pl.program_id(1)
    n_strips = pl.num_programs(1)
    slot = hs % 2

    def start_fetch(strip, slot_):
        row0 = pl.multiple_of(strip * th, th)
        pltpu.make_async_copy(x_hbm.at[n, pl.ds(row0, rows)],
                              xbuf.at[slot_], copy_sem.at[slot_]).start()

    # Prologue: only the first strip of a batch element fetches itself; later
    # strips were prefetched by the previous grid step.
    @pl.when(hs == 0)
    def _():
        start_fetch(0, 0)

    # Prefetch the next strip of this batch element into the other buffer
    # (overlaps with this strip's compute).
    @pl.when(hs + 1 < n_strips)
    def _():
        start_fetch(hs + 1, 1 - slot)

    # Wait for this strip's halo rows.
    pltpu.make_async_copy(x_hbm.at[n, pl.ds(0, rows)],
                          xbuf.at[slot], copy_sem.at[slot]).wait()

    xs = xbuf.at[slot]                     # ref view, (th+4, wp, cpi)

    # ---- conv1: 9 per-tap matmuls, f32 accumulation (BN scale pre-folded) ----
    acc1 = None
    for dy in range(3):
        for dx in range(3):
            patch = xs[dy:dy + r1, dx:dx + w1p, :].reshape(r1 * w1p, cpi)
            part = jnp.dot(patch, w1_ref[dy * 3 + dx],
                           preferred_element_type=jnp.float32)
            acc1 = part if acc1 is None else acc1 + part
    h1 = jnp.maximum(acc1 + t1_ref[...], 0.0)          # fused bias+BN shift, ReLU
    h1 = h1.reshape(r1, w1p, cpo).astype(xs.dtype)     # back to MXU dtype

    # ---- conv2: 9 per-tap matmuls, f32 accumulation ----
    acc2 = None
    for dy in range(3):
        for dx in range(3):
            patch = h1[dy:dy + th, dx:dx + w2p, :].reshape(th * w2p, cpo)
            part = jnp.dot(patch, w2_ref[dy * 3 + dx],
                           preferred_element_type=jnp.float32)
            acc2 = part if acc2 is None else acc2 + part
    h2 = jnp.maximum(acc2 + t2_ref[...], 0.0)
    out_ref[...] = h2.reshape(th, w2p, cpo).astype(out_ref.dtype)


def double_conv_pallas(x_nchw, w1_oihw, b1, g1, be1, m1, v1,
                       w2_oihw, b2, g2, be2, m2, v2,
                       *, eps=1e-5, tile_h=16, compute_dtype=jnp.bfloat16):
    """DoubleConv forward (eval-mode BN), NCHW in / NCHW out."""
    N, Cin, H, W = x_nchw.shape
    Cout = w1_oihw.shape[0]
    H2, W2 = H - 4, W - 4
    assert H2 > 0 and W2 > 0, "input too small for two VALID 3x3 convs"

    LANE, SUB = 128, 8
    Cpi = _round_up(Cin, LANE)        # lane-dense input channels
    Cpo = _round_up(Cout, LANE)       # lane-dense output channels

    th = max(1, min(tile_h, H2))      # output rows per grid step
    n_strips = pl.cdiv(H2, th)
    H2p = n_strips * th               # padded output height (multiple of th)
    W2p = _round_up(W2, SUB)          # padded output width (sublane aligned)
    W1p = W2p + 8                     # 8-aligned conv1 width computed in-kernel
    Hp = H2p + 4                      # padded input extents
    Wp = W1p + 8                      # = W2p + 16, sublane aligned

    # NCHW -> NHWC + zero padding + cast to MXU dtype.
    x = jnp.transpose(x_nchw, (0, 2, 3, 1))
    x = jnp.pad(x, ((0, 0), (0, Hp - H), (0, Wp - W), (0, Cpi - Cin)))
    x = x.astype(compute_dtype)

    def fold(w_oihw, bias, gamma, beta, mean, var, cin_pad):
        # y = ReLU((conv(x,w)+b - m)*s + beta) == ReLU(conv(x, w*s) + t)
        scale = gamma / jnp.sqrt(var + eps)
        shift = beta + scale * (bias - mean)
        w = jnp.transpose(w_oihw, (2, 3, 1, 0))              # OIHW -> HWIO
        w = w * scale[None, None, None, :]                   # fold BN scale
        w = jnp.pad(w, ((0, 0), (0, 0),
                        (0, cin_pad - w.shape[2]), (0, Cpo - w.shape[3])))
        w = w.reshape(9, cin_pad, Cpo).astype(compute_dtype)  # per-tap layout
        t = jnp.pad(shift, (0, Cpo - Cout)).reshape(1, Cpo).astype(jnp.float32)
        return w, t

    w1, t1 = fold(w1_oihw, b1, g1, be1, m1, v1, Cpi)
    w2, t2 = fold(w2_oihw, b2, g2, be2, m2, v2, Cpo)

    isz = jnp.dtype(compute_dtype).itemsize
    osz = jnp.dtype(x_nchw.dtype).itemsize

    # Advisory cost estimate for XLA's scheduler.
    flops = 2 * N * n_strips * ((th + 2) * W1p * 9 * Cpi * Cpo
                                + th * W2p * 9 * Cpo * Cpo)
    bytes_accessed = (N * Hp * Wp * Cpi * isz
                      + 9 * (Cpi + Cpo) * Cpo * isz
                      + N * H2p * W2p * Cpo * osz)
    cost = pl.CostEstimate(flops=int(flops), transcendentals=0,
                           bytes_accessed=int(bytes_accessed))

    # VMEM budget: strip line buffer + weights + out block + f32 accumulators,
    # clamped to ~90% of the chip's physical VMEM.  (For very large W at this
    # tile_h, reduce tile_h.)
    need = (2 * (th + 4) * Wp * Cpi * isz                 # double-buffered xbuf
            + 2 * 9 * (Cpi + Cpo) * Cpo * isz             # weights (x2 buffers)
            + 2 * th * W2p * Cpo * osz                    # output block
            + ((th + 2) * W1p + th * W2p) * Cpo * 4       # f32 accumulators
            + (th + 2) * W1p * Cpo * isz)                 # h1 intermediate
    vmem_limit = int(min(max(2 * need + (8 << 20), 32 << 20),
                         0.9 * _vmem_capacity_bytes()))

    out = pl.pallas_call(
        _double_conv_kernel,
        out_shape=jax.ShapeDtypeStruct((N, H2p, W2p, Cpo), x_nchw.dtype),
        grid_spec=pltpu.PrefetchScalarGridSpec(
            num_scalar_prefetch=0,
            grid=(N, n_strips),
            in_specs=[
                pl.BlockSpec(memory_space=pl.ANY),        # x stays in HBM
                pl.BlockSpec((9, Cpi, Cpo), lambda n, h: (0, 0, 0)),
                pl.BlockSpec((1, Cpo), lambda n, h: (0, 0)),
                pl.BlockSpec((9, Cpo, Cpo), lambda n, h: (0, 0, 0)),
                pl.BlockSpec((1, Cpo), lambda n, h: (0, 0)),
            ],
            out_specs=pl.BlockSpec((None, th, W2p, Cpo),
                                   lambda n, h: (n, h, 0, 0)),
            scratch_shapes=[
                pltpu.VMEM((2, th + 4, Wp, Cpi), compute_dtype),
                pltpu.SemaphoreType.DMA((2,)),
            ],
        ),
        compiler_params=pltpu.CompilerParams(
            dimension_semantics=("parallel", "arbitrary"),
            vmem_limit_bytes=vmem_limit,
        ),
        cost_estimate=cost,
    )(x, w1, t1, w2, t2)

    out = out[:, :H2, :W2, :Cout]                 # crop spatial/channel padding
    return jnp.transpose(out, (0, 3, 1, 2))       # NHWC -> NCHW


def _ref_double_conv(x, w1_oihw, b1, g1, be1, m1, v1,
                     w2_oihw, b2, g2, be2, m2, v2, eps=1e-5):
    """Pure-JAX reference mirroring PyTorch semantics (NCHW, eval-mode BN)."""
    def block(x, w, b, g, be, m, v):
        y = lax.conv_general_dilated(
            x, w, window_strides=(1, 1), padding='VALID',
            dimension_numbers=('NCHW', 'OIHW', 'NCHW'))
        y = y + b[None, :, None, None]
        y = ((y - m[None, :, None, None]) /
             jnp.sqrt(v[None, :, None, None] + eps) *
             g[None, :, None, None] + be[None, :, None, None])
        return jnp.maximum(y, 0.0)
    y = block(x, w1_oihw, b1, g1, be1, m1, v1)
    return block(y, w2_oihw, b2, g2, be2, m2, v2)


if __name__ == "__main__":
    key = jax.random.PRNGKey(0)
    ks = jax.random.split(key, 16)

    N, Cin, Cout, H, W = 2, 4, 8, 16, 16
    eps = 1e-5

    x = jax.random.normal(ks[0], (N, Cin, H, W), jnp.float32)

    # Conv1 params (PyTorch OIHW layout), BN1 params (eval-mode running stats).
    w1 = jax.random.normal(ks[1], (Cout, Cin, 3, 3), jnp.float32) * 0.2
    b1 = jax.random.normal(ks[2], (Cout,), jnp.float32) * 0.1
    g1 = 1.0 + 0.1 * jax.random.normal(ks[3], (Cout,), jnp.float32)
    be1 = 0.1 * jax.random.normal(ks[4], (Cout,), jnp.float32)
    m1 = 0.1 * jax.random.normal(ks[5], (Cout,), jnp.float32)
    v1 = 0.5 + jax.random.uniform(ks[6], (Cout,), jnp.float32)

    # Conv2 params, BN2 params.
    w2 = jax.random.normal(ks[7], (Cout, Cout, 3, 3), jnp.float32) * 0.2
    b2 = jax.random.normal(ks[8], (Cout,), jnp.float32) * 0.1
    g2 = 1.0 + 0.1 * jax.random.normal(ks[9], (Cout,), jnp.float32)
    be2 = 0.1 * jax.random.normal(ks[10], (Cout,), jnp.float32)
    m2 = 0.1 * jax.random.normal(ks[11], (Cout,), jnp.float32)
    v2 = 0.5 + jax.random.uniform(ks[12], (Cout,), jnp.float32)

    ref = _ref_double_conv(x, w1, b1, g1, be1, m1, v1,
                           w2, b2, g2, be2, m2, v2, eps)

    # f32 matmul path, small strips (exercises the multi-strip halo DMA chain).
    out = double_conv_pallas(x, w1, b1, g1, be1, m1, v1,
                             w2, b2, g2, be2, m2, v2,
                             eps=eps, tile_h=4, compute_dtype=jnp.float32)
    out = jax.block_until_ready(out)
    assert out.shape == (N, Cout, H - 4, W - 4), out.shape
    assert jnp.allclose(out, ref, atol=1e-3, rtol=1e-3), (
        float(jnp.max(jnp.abs(out - ref))))

    # Default path: bf16 MXU inputs, f32 accumulation, default tile_h
    # (single strip per image at this size); loose sanity check.
    out_bf16 = double_conv_pallas(x, w1, b1, g1, be1, m1, v1,
                                  w2, b2, g2, be2, m2, v2, eps=eps)
    out_bf16 = jax.block_until_ready(out_bf16)
    assert out_bf16.shape == (N, Cout, H - 4, W - 4), out_bf16.shape
    assert float(jnp.max(jnp.abs(out_bf16 - ref))) < 0.5

    print("KERNEL_OK")
</pallas_src>

<mosaic_0001>
module attributes {stable_mosaic.version = 11 : i64} {
  func.func @_double_conv_kernel(%arg0: i32, %arg1: i32, %arg2: memref<2x16x32x128xf32, #tpu.memory_space<any>>, %arg3: memref<9x128x128xf32, #tpu.memory_space<vmem>>, %arg4: memref<1x128xf32, #tpu.memory_space<vmem>>, %arg5: memref<9x128x128xf32, #tpu.memory_space<vmem>>, %arg6: memref<1x128xf32, #tpu.memory_space<vmem>>, %arg7: memref<1x4x16x128xf32, #tpu.memory_space<vmem>>, %arg8: memref<2x8x32x128xf32, #tpu.memory_space<vmem>>, %arg9: memref<2x!tpu.dma_semaphore, #tpu.memory_space<semaphore_mem>>) attributes {dimension_semantics = [#tpu.dimension_semantics<parallel>, #tpu.dimension_semantics<arbitrary>], iteration_bounds = array<i64: 2, 3>, scalar_prefetch = 0 : i64, scratch_operands = 2 : i64, tpu.core_type = #tpu.core_type<tc>, window_params = [{}, {pipeline_mode = #tpu.pipeline_mode<synchronous>, transform_indices = @transform_1, window_bounds = array<i64: 9, 128, 128>}, {pipeline_mode = #tpu.pipeline_mode<synchronous>, transform_indices = @transform_2, window_bounds = array<i64: 1, 128>}, {pipeline_mode = #tpu.pipeline_mode<synchronous>, transform_indices = @transform_3, window_bounds = array<i64: 9, 128, 128>}, {pipeline_mode = #tpu.pipeline_mode<synchronous>, transform_indices = @transform_4, window_bounds = array<i64: 1, 128>}, {transform_indices = @transform_5, window_bounds = array<i64: 1, 4, 16, 128>}]} {
    %c2_i32 = arith.constant 2 : i32
    %c0_i32 = arith.constant 0 : i32
    %0 = arith.cmpi eq, %c2_i32, %c0_i32 : i32
    %c1_i32 = arith.constant 1 : i32
    %1 = arith.select %0, %c1_i32, %c2_i32 : i32
    %2 = arith.remsi %arg1, %1 : i32
    %c0_i32_0 = arith.constant 0 : i32
    %3 = arith.cmpi ne, %2, %c0_i32_0 : i32
    %c0_i32_1 = arith.constant 0 : i32
    %4 = arith.cmpi slt, %2, %c0_i32_1 : i32
    %c0_i32_2 = arith.constant 0 : i32
    %5 = arith.cmpi slt, %1, %c0_i32_2 : i32
    %6 = arith.xori %4, %5 : i1
    %7 = arith.andi %6, %3 : i1
    %8 = arith.addi %2, %1 : i32
    %9 = arith.select %7, %8, %2 : i32
    %c0_i32_3 = arith.constant 0 : i32
    %10 = arith.cmpi eq, %arg1, %c0_i32_3 : i32
    %11 = arith.extui %10 : i1 to i32
    %c0_i32_4 = arith.constant 0 : i32
    %12 = arith.cmpi ne, %11, %c0_i32_4 : i32
    scf.if %12 {
      %c0_i32_139 = arith.constant 0 : i32
      %162 = tpu.assume_multiple %c0_i32_139, 4 : i32
      %c0_i32_140 = arith.constant 0 : i32
      %c0_i32_141 = arith.constant 0 : i32
      %c0_i32_142 = arith.constant 0 : i32
      %c0_i32_143 = arith.constant 0 : i32
      %163 = tpu.memref_slice %arg2[%arg0, %162, %c0_i32_142, %c0_i32_143] : memref<2x16x32x128xf32, #tpu.memory_space<any>> -> memref<1x8x32x128xf32, #tpu.memory_space<any>>
      %164 = tpu.memref_squeeze %163 : memref<1x8x32x128xf32, #tpu.memory_space<any>> -> memref<8x32x128xf32, #tpu.memory_space<any>>
      %c0_i32_144 = arith.constant 0 : i32
      %c0_i32_145 = arith.constant 0 : i32
      %c0_i32_146 = arith.constant 0 : i32
      %165 = tpu.memref_slice %arg8[%c0_i32_140, %c0_i32_144, %c0_i32_145, %c0_i32_146] : memref<2x8x32x128xf32, #tpu.memory_space<vmem>> -> memref<1x8x32x128xf32, #tpu.memory_space<vmem>>
      %166 = tpu.memref_squeeze %165 : memref<1x8x32x128xf32, #tpu.memory_space<vmem>> -> memref<8x32x128xf32, #tpu.memory_space<vmem>>
      %167 = tpu.memref_slice %arg9[%c0_i32_141] : memref<2x!tpu.dma_semaphore, #tpu.memory_space<semaphore_mem>> -> memref<1x!tpu.dma_semaphore, #tpu.memory_space<semaphore_mem>>
      %168 = tpu.memref_squeeze %167 : memref<1x!tpu.dma_semaphore, #tpu.memory_space<semaphore_mem>> -> memref<!tpu.dma_semaphore, #tpu.memory_space<semaphore_mem>>
      tpu.enqueue_dma source(%164 : memref<8x32x128xf32, #tpu.memory_space<any>>) target(%166 : memref<8x32x128xf32, #tpu.memory_space<vmem>>) target_semaphore(%168 : memref<!tpu.dma_semaphore, #tpu.memory_space<semaphore_mem>>)
    } else {
    }
    %c1_i32_5 = arith.constant 1 : i32
    %13 = arith.addi %arg1, %c1_i32_5 : i32
    %c3_i32 = arith.constant 3 : i32
    %14 = arith.cmpi slt, %13, %c3_i32 : i32
    %15 = arith.extui %14 : i1 to i32
    %c0_i32_6 = arith.constant 0 : i32
    %16 = arith.cmpi ne, %15, %c0_i32_6 : i32
    scf.if %16 {
      %c1_i32_139 = arith.constant 1 : i32
      %162 = arith.addi %arg1, %c1_i32_139 : i32
      %c1_i32_140 = arith.constant 1 : i32
      %163 = arith.subi %c1_i32_140, %9 : i32
      %c4_i32 = arith.constant 4 : i32
      %164 = arith.muli %162, %c4_i32 : i32
      %165 = tpu.assume_multiple %164, 4 : i32
      %c0_i32_141 = arith.constant 0 : i32
      %c0_i32_142 = arith.constant 0 : i32
      %166 = tpu.memref_slice %arg2[%arg0, %165, %c0_i32_141, %c0_i32_142] : memref<2x16x32x128xf32, #tpu.memory_space<any>> -> memref<1x8x32x128xf32, #tpu.memory_space<any>>
      %167 = tpu.memref_squeeze %166 : memref<1x8x32x128xf32, #tpu.memory_space<any>> -> memref<8x32x128xf32, #tpu.memory_space<any>>
      %c0_i32_143 = arith.constant 0 : i32
      %c0_i32_144 = arith.constant 0 : i32
      %c0_i32_145 = arith.constant 0 : i32
      %168 = tpu.memref_slice %arg8[%163, %c0_i32_143, %c0_i32_144, %c0_i32_145] : memref<2x8x32x128xf32, #tpu.memory_space<vmem>> -> memref<1x8x32x128xf32, #tpu.memory_space<vmem>>
      %169 = tpu.memref_squeeze %168 : memref<1x8x32x128xf32, #tpu.memory_space<vmem>> -> memref<8x32x128xf32, #tpu.memory_space<vmem>>
      %170 = tpu.memref_slice %arg9[%163] : memref<2x!tpu.dma_semaphore, #tpu.memory_space<semaphore_mem>> -> memref<1x!tpu.dma_semaphore, #tpu.memory_space<semaphore_mem>>
      %171 = tpu.memref_squeeze %170 : memref<1x!tpu.dma_semaphore, #tpu.memory_space<semaphore_mem>> -> memref<!tpu.dma_semaphore, #tpu.memory_space<semaphore_mem>>
      tpu.enqueue_dma source(%167 : memref<8x32x128xf32, #tpu.memory_space<any>>) target(%169 : memref<8x32x128xf32, #tpu.memory_space<vmem>>) target_semaphore(%171 : memref<!tpu.dma_semaphore, #tpu.memory_space<semaphore_mem>>)
    } else {
    }
    %c0_i32_7 = arith.constant 0 : i32
    %c0_i32_8 = arith.constant 0 : i32
    %c0_i32_9 = arith.constant 0 : i32
    %17 = tpu.memref_slice %arg2[%arg0, %c0_i32_7, %c0_i32_8, %c0_i32_9] : memref<2x16x32x128xf32, #tpu.memory_space<any>> -> memref<1x8x32x128xf32, #tpu.memory_space<any>>
    %18 = tpu.memref_squeeze %17 : memref<1x8x32x128xf32, #tpu.memory_space<any>> -> memref<8x32x128xf32, #tpu.memory_space<any>>
    %c0_i32_10 = arith.constant 0 : i32
    %c0_i32_11 = arith.constant 0 : i32
    %c0_i32_12 = arith.constant 0 : i32
    %19 = tpu.memref_slice %arg8[%9, %c0_i32_10, %c0_i32_11, %c0_i32_12] : memref<2x8x32x128xf32, #tpu.memory_space<vmem>> -> memref<1x8x32x128xf32, #tpu.memory_space<vmem>>
    %20 = tpu.memref_squeeze %19 : memref<1x8x32x128xf32, #tpu.memory_space<vmem>> -> memref<8x32x128xf32, #tpu.memory_space<vmem>>
    %21 = tpu.memref_slice %arg9[%9] : memref<2x!tpu.dma_semaphore, #tpu.memory_space<semaphore_mem>> -> memref<1x!tpu.dma_semaphore, #tpu.memory_space<semaphore_mem>>
    %22 = tpu.memref_squeeze %21 : memref<1x!tpu.dma_semaphore, #tpu.memory_space<semaphore_mem>> -> memref<!tpu.dma_semaphore, #tpu.memory_space<semaphore_mem>>
    tpu.wait_dma2 semaphore(%22 : memref<!tpu.dma_semaphore, #tpu.memory_space<semaphore_mem>>) src(%18 : memref<8x32x128xf32, #tpu.memory_space<any>>) dst(%20 : memref<8x32x128xf32, #tpu.memory_space<vmem>>)
    %c0_i32_13 = arith.constant 0 : i32
    %c0_i32_14 = arith.constant 0 : i32
    %c0_i32_15 = arith.constant 0 : i32
    %23 = tpu.memref_slice %arg8[%9, %c0_i32_13, %c0_i32_14, %c0_i32_15] : memref<2x8x32x128xf32, #tpu.memory_space<vmem>> -> memref<1x8x32x128xf32, #tpu.memory_space<vmem>>
    %24 = tpu.memref_squeeze %23 : memref<1x8x32x128xf32, #tpu.memory_space<vmem>> -> memref<8x32x128xf32, #tpu.memory_space<vmem>>
    %c0 = arith.constant 0 : index
    %c0_16 = arith.constant 0 : index
    %c0_17 = arith.constant 0 : index
    %25 = vector.load %24[%c0, %c0_16, %c0_17] : memref<8x32x128xf32, #tpu.memory_space<vmem>>, vector<6x24x128xf32>
    %26 = vector.shape_cast %25 : vector<6x24x128xf32> to vector<144x128xf32>
    %c0_18 = arith.constant 0 : index
    %c0_19 = arith.constant 0 : index
    %c0_20 = arith.constant 0 : index
    %27 = vector.load %arg3[%c0_18, %c0_19, %c0_20] : memref<9x128x128xf32, #tpu.memory_space<vmem>>, vector<1x128x128xf32>
    %28 = vector.shape_cast %27 : vector<1x128x128xf32> to vector<128x128xf32>
    %cst = arith.constant dense<0.000000e+00> : vector<144x128xf32>
    %29 = tpu.matmul %26, %28, %cst {dimension_numbers = #tpu.dot_dimension_numbers<[1], [0], [0], [1], [0, 0, 1, 1], [], []>} : vector<144x128xf32>, vector<128x128xf32>, vector<144x128xf32> -> vector<144x128xf32>
    %c0_i32_21 = arith.constant 0 : i32
    %c0_i32_22 = arith.constant 0 : i32
    %c0_i32_23 = arith.constant 0 : i32
    %30 = tpu.memref_slice %arg8[%9, %c0_i32_21, %c0_i32_22, %c0_i32_23] : memref<2x8x32x128xf32, #tpu.memory_space<vmem>> -> memref<1x8x32x128xf32, #tpu.memory_space<vmem>>
    %31 = tpu.memref_squeeze %30 : memref<1x8x32x128xf32, #tpu.memory_space<vmem>> -> memref<8x32x128xf32, #tpu.memory_space<vmem>>
    %c0_24 = arith.constant 0 : index
    %c1 = arith.constant 1 : index
    %c0_25 = arith.constant 0 : index
    %32 = vector.load %31[%c0_24, %c1, %c0_25] : memref<8x32x128xf32, #tpu.memory_space<vmem>>, vector<6x24x128xf32>
    %33 = vector.shape_cast %32 : vector<6x24x128xf32> to vector<144x128xf32>
    %c1_26 = arith.constant 1 : index
    %c0_27 = arith.constant 0 : index
    %c0_28 = arith.constant 0 : index
    %34 = vector.load %arg3[%c1_26, %c0_27, %c0_28] : memref<9x128x128xf32, #tpu.memory_space<vmem>>, vector<1x128x128xf32>
    %35 = vector.shape_cast %34 : vector<1x128x128xf32> to vector<128x128xf32>
    %cst_29 = arith.constant dense<0.000000e+00> : vector<144x128xf32>
    %36 = tpu.matmul %33, %35, %cst_29 {dimension_numbers = #tpu.dot_dimension_numbers<[1], [0], [0], [1], [0, 0, 1, 1], [], []>} : vector<144x128xf32>, vector<128x128xf32>, vector<144x128xf32> -> vector<144x128xf32>
    %37 = arith.addf %29, %36 : vector<144x128xf32>
    %c0_i32_30 = arith.constant 0 : i32
    %c0_i32_31 = arith.constant 0 : i32
    %c0_i32_32 = arith.constant 0 : i32
    %38 = tpu.memref_slice %arg8[%9, %c0_i32_30, %c0_i32_31, %c0_i32_32] : memref<2x8x32x128xf32, #tpu.memory_space<vmem>> -> memref<1x8x32x128xf32, #tpu.memory_space<vmem>>
    %39 = tpu.memref_squeeze %38 : memref<1x8x32x128xf32, #tpu.memory_space<vmem>> -> memref<8x32x128xf32, #tpu.memory_space<vmem>>
    %c0_33 = arith.constant 0 : index
    %c2 = arith.constant 2 : index
    %c0_34 = arith.constant 0 : index
    %40 = vector.load %39[%c0_33, %c2, %c0_34] : memref<8x32x128xf32, #tpu.memory_space<vmem>>, vector<6x24x128xf32>
    %41 = vector.shape_cast %40 : vector<6x24x128xf32> to vector<144x128xf32>
    %c2_35 = arith.constant 2 : index
    %c0_36 = arith.constant 0 : index
    %c0_37 = arith.constant 0 : index
    %42 = vector.load %arg3[%c2_35, %c0_36, %c0_37] : memref<9x128x128xf32, #tpu.memory_space<vmem>>, vector<1x128x128xf32>
    %43 = vector.shape_cast %42 : vector<1x128x128xf32> to vector<128x128xf32>
    %cst_38 = arith.constant dense<0.000000e+00> : vector<144x128xf32>
    %44 = tpu.matmul %41, %43, %cst_38 {dimension_numbers = #tpu.dot_dimension_numbers<[1], [0], [0], [1], [0, 0, 1, 1], [], []>} : vector<144x128xf32>, vector<128x128xf32>, vector<144x128xf32> -> vector<144x128xf32>
    %45 = arith.addf %37, %44 : vector<144x128xf32>
    %c0_i32_39 = arith.constant 0 : i32
    %c0_i32_40 = arith.constant 0 : i32
    %c0_i32_41 = arith.constant 0 : i32
    %46 = tpu.memref_slice %arg8[%9, %c0_i32_39, %c0_i32_40, %c0_i32_41] : memref<2x8x32x128xf32, #tpu.memory_space<vmem>> -> memref<1x8x32x128xf32, #tpu.memory_space<vmem>>
    %47 = tpu.memref_squeeze %46 : memref<1x8x32x128xf32, #tpu.memory_space<vmem>> -> memref<8x32x128xf32, #tpu.memory_space<vmem>>
    %c1_42 = arith.constant 1 : index
    %c0_43 = arith.constant 0 : index
    %c0_44 = arith.constant 0 : index
    %48 = vector.load %47[%c1_42, %c0_43, %c0_44] : memref<8x32x128xf32, #tpu.memory_space<vmem>>, vector<6x24x128xf32>
    %49 = vector.shape_cast %48 : vector<6x24x128xf32> to vector<144x128xf32>
    %c3 = arith.constant 3 : index
    %c0_45 = arith.constant 0 : index
    %c0_46 = arith.constant 0 : index
    %50 = vector.load %arg3[%c3, %c0_45, %c0_46] : memref<9x128x128xf32, #tpu.memory_space<vmem>>, vector<1x128x128xf32>
    %51 = vector.shape_cast %50 : vector<1x128x128xf32> to vector<128x128xf32>
    %cst_47 = arith.constant dense<0.000000e+00> : vector<144x128xf32>
    %52 = tpu.matmul %49, %51, %cst_47 {dimension_numbers = #tpu.dot_dimension_numbers<[1], [0], [0], [1], [0, 0, 1, 1], [], []>} : vector<144x128xf32>, vector<128x128xf32>, vector<144x128xf32> -> vector<144x128xf32>
    %53 = arith.addf %45, %52 : vector<144x128xf32>
    %c0_i32_48 = arith.constant 0 : i32
    %c0_i32_49 = arith.constant 0 : i32
    %c0_i32_50 = arith.constant 0 : i32
    %54 = tpu.memref_slice %arg8[%9, %c0_i32_48, %c0_i32_49, %c0_i32_50] : memref<2x8x32x128xf32, #tpu.memory_space<vmem>> -> memref<1x8x32x128xf32, #tpu.memory_space<vmem>>
    %55 = tpu.memref_squeeze %54 : memref<1x8x32x128xf32, #tpu.memory_space<vmem>> -> memref<8x32x128xf32, #tpu.memory_space<vmem>>
    %c1_51 = arith.constant 1 : index
    %c1_52 = arith.constant 1 : index
    %c0_53 = arith.constant 0 : index
    %56 = vector.load %55[%c1_51, %c1_52, %c0_53] : memref<8x32x128xf32, #tpu.memory_space<vmem>>, vector<6x24x128xf32>
    %57 = vector.shape_cast %56 : vector<6x24x128xf32> to vector<144x128xf32>
    %c4 = arith.constant 4 : index
    %c0_54 = arith.constant 0 : index
    %c0_55 = arith.constant 0 : index
    %58 = vector.load %arg3[%c4, %c0_54, %c0_55] : memref<9x128x128xf32, #tpu.memory_space<vmem>>, vector<1x128x128xf32>
    %59 = vector.shape_cast %58 : vector<1x128x128xf32> to vector<128x128xf32>
    %cst_56 = arith.constant dense<0.000000e+00> : vector<144x128xf32>
    %60 = tpu.matmul %57, %59, %cst_56 {dimension_numbers = #tpu.dot_dimension_numbers<[1], [0], [0], [1], [0, 0, 1, 1], [], []>} : vector<144x128xf32>, vector<128x128xf32>, vector<144x128xf32> -> vector<144x128xf32>
    %61 = arith.addf %53, %60 : vector<144x128xf32>
    %c0_i32_57 = arith.constant 0 : i32
    %c0_i32_58 = arith.constant 0 : i32
    %c0_i32_59 = arith.constant 0 : i32
    %62 = tpu.memref_slice %arg8[%9, %c0_i32_57, %c0_i32_58, %c0_i32_59] : memref<2x8x32x128xf32, #tpu.memory_space<vmem>> -> memref<1x8x32x128xf32, #tpu.memory_space<vmem>>
    %63 = tpu.memref_squeeze %62 : memref<1x8x32x128xf32, #tpu.memory_space<vmem>> -> memref<8x32x128xf32, #tpu.memory_space<vmem>>
    %c1_60 = arith.constant 1 : index
    %c2_61 = arith.constant 2 : index
    %c0_62 = arith.constant 0 : index
    %64 = vector.load %63[%c1_60, %c2_61, %c0_62] : memref<8x32x128xf32, #tpu.memory_space<vmem>>, vector<6x24x128xf32>
    %65 = vector.shape_cast %64 : vector<6x24x128xf32> to vector<144x128xf32>
    %c5 = arith.constant 5 : index
    %c0_63 = arith.constant 0 : index
    %c0_64 = arith.constant 0 : index
    %66 = vector.load %arg3[%c5, %c0_63, %c0_64] : memref<9x128x128xf32, #tpu.memory_space<vmem>>, vector<1x128x128xf32>
    %67 = vector.shape_cast %66 : vector<1x128x128xf32> to vector<128x128xf32>
    %cst_65 = arith.constant dense<0.000000e+00> : vector<144x128xf32>
    %68 = tpu.matmul %65, %67, %cst_65 {dimension_numbers = #tpu.dot_dimension_numbers<[1], [0], [0], [1], [0, 0, 1, 1], [], []>} : vector<144x128xf32>, vector<128x128xf32>, vector<144x128xf32> -> vector<144x128xf32>
    %69 = arith.addf %61, %68 : vector<144x128xf32>
    %c0_i32_66 = arith.constant 0 : i32
    %c0_i32_67 = arith.constant 0 : i32
    %c0_i32_68 = arith.constant 0 : i32
    %70 = tpu.memref_slice %arg8[%9, %c0_i32_66, %c0_i32_67, %c0_i32_68] : memref<2x8x32x128xf32, #tpu.memory_space<vmem>> -> memref<1x8x32x128xf32, #tpu.memory_space<vmem>>
    %71 = tpu.memref_squeeze %70 : memref<1x8x32x128xf32, #tpu.memory_space<vmem>> -> memref<8x32x128xf32, #tpu.memory_space<vmem>>
    %c2_69 = arith.constant 2 : index
    %c0_70 = arith.constant 0 : index
    %c0_71 = arith.constant 0 : index
    %72 = vector.load %71[%c2_69, %c0_70, %c0_71] : memref<8x32x128xf32, #tpu.memory_space<vmem>>, vector<6x24x128xf32>
    %73 = vector.shape_cast %72 : vector<6x24x128xf32> to vector<144x128xf32>
    %c6 = arith.constant 6 : index
    %c0_72 = arith.constant 0 : index
    %c0_73 = arith.constant 0 : index
    %74 = vector.load %arg3[%c6, %c0_72, %c0_73] : memref<9x128x128xf32, #tpu.memory_space<vmem>>, vector<1x128x128xf32>
    %75 = vector.shape_cast %74 : vector<1x128x128xf32> to vector<128x128xf32>
    %cst_74 = arith.constant dense<0.000000e+00> : vector<144x128xf32>
    %76 = tpu.matmul %73, %75, %cst_74 {dimension_numbers = #tpu.dot_dimension_numbers<[1], [0], [0], [1], [0, 0, 1, 1], [], []>} : vector<144x128xf32>, vector<128x128xf32>, vector<144x128xf32> -> vector<144x128xf32>
    %77 = arith.addf %69, %76 : vector<144x128xf32>
    %c0_i32_75 = arith.constant 0 : i32
    %c0_i32_76 = arith.constant 0 : i32
    %c0_i32_77 = arith.constant 0 : i32
    %78 = tpu.memref_slice %arg8[%9, %c0_i32_75, %c0_i32_76, %c0_i32_77] : memref<2x8x32x128xf32, #tpu.memory_space<vmem>> -> memref<1x8x32x128xf32, #tpu.memory_space<vmem>>
    %79 = tpu.memref_squeeze %78 : memref<1x8x32x128xf32, #tpu.memory_space<vmem>> -> memref<8x32x128xf32, #tpu.memory_space<vmem>>
    %c2_78 = arith.constant 2 : index
    %c1_79 = arith.constant 1 : index
    %c0_80 = arith.constant 0 : index
    %80 = vector.load %79[%c2_78, %c1_79, %c0_80] : memref<8x32x128xf32, #tpu.memory_space<vmem>>, vector<6x24x128xf32>
    %81 = vector.shape_cast %80 : vector<6x24x128xf32> to vector<144x128xf32>
    %c7 = arith.constant 7 : index
    %c0_81 = arith.constant 0 : index
    %c0_82 = arith.constant 0 : index
    %82 = vector.load %arg3[%c7, %c0_81, %c0_82] : memref<9x128x128xf32, #tpu.memory_space<vmem>>, vector<1x128x128xf32>
    %83 = vector.shape_cast %82 : vector<1x128x128xf32> to vector<128x128xf32>
    %cst_83 = arith.constant dense<0.000000e+00> : vector<144x128xf32>
    %84 = tpu.matmul %81, %83, %cst_83 {dimension_numbers = #tpu.dot_dimension_numbers<[1], [0], [0], [1], [0, 0, 1, 1], [], []>} : vector<144x128xf32>, vector<128x128xf32>, vector<144x128xf32> -> vector<144x128xf32>
    %85 = arith.addf %77, %84 : vector<144x128xf32>
    %c0_i32_84 = arith.constant 0 : i32
    %c0_i32_85 = arith.constant 0 : i32
    %c0_i32_86 = arith.constant 0 : i32
    %86 = tpu.memref_slice %arg8[%9, %c0_i32_84, %c0_i32_85, %c0_i32_86] : memref<2x8x32x128xf32, #tpu.memory_space<vmem>> -> memref<1x8x32x128xf32, #tpu.memory_space<vmem>>
    %87 = tpu.memref_squeeze %86 : memref<1x8x32x128xf32, #tpu.memory_space<vmem>> -> memref<8x32x128xf32, #tpu.memory_space<vmem>>
    %c2_87 = arith.constant 2 : index
    %c2_88 = arith.constant 2 : index
    %c0_89 = arith.constant 0 : index
    %88 = vector.load %87[%c2_87, %c2_88, %c0_89] : memref<8x32x128xf32, #tpu.memory_space<vmem>>, vector<6x24x128xf32>
    %89 = vector.shape_cast %88 : vector<6x24x128xf32> to vector<144x128xf32>
    %c8 = arith.constant 8 : index
    %c0_90 = arith.constant 0 : index
    %c0_91 = arith.constant 0 : index
    %90 = vector.load %arg3[%c8, %c0_90, %c0_91] : memref<9x128x128xf32, #tpu.memory_space<vmem>>, vector<1x128x128xf32>
    %91 = vector.shape_cast %90 : vector<1x128x128xf32> to vector<128x128xf32>
    %cst_92 = arith.constant dense<0.000000e+00> : vector<144x128xf32>
    %92 = tpu.matmul %89, %91, %cst_92 {dimension_numbers = #tpu.dot_dimension_numbers<[1], [0], [0], [1], [0, 0, 1, 1], [], []>} : vector<144x128xf32>, vector<128x128xf32>, vector<144x128xf32> -> vector<144x128xf32>
    %93 = arith.addf %85, %92 : vector<144x128xf32>
    %c0_93 = arith.constant 0 : index
    %c0_94 = arith.constant 0 : index
    %94 = vector.load %arg4[%c0_93, %c0_94] : memref<1x128xf32, #tpu.memory_space<vmem>>, vector<1x128xf32>
    %95 = vector.broadcast %94 : vector<1x128xf32> to vector<144x128xf32>
    %96 = arith.addf %93, %95 : vector<144x128xf32>
    %cst_95 = arith.constant 0.000000e+00 : f32
    %97 = vector.broadcast %cst_95 : f32 to vector<144x128xf32>
    %98 = arith.maximumf %96, %97 : vector<144x128xf32>
    %99 = vector.shape_cast %98 : vector<144x128xf32> to vector<6x24x128xf32>
    %100 = vector.extract_strided_slice %99 {offsets = [0, 0, 0], sizes = [4, 16, 128], strides = [1, 1, 1]} : vector<6x24x128xf32> to vector<4x16x128xf32>
    %101 = vector.shape_cast %100 : vector<4x16x128xf32> to vector<64x128xf32>
    %c0_96 = arith.constant 0 : index
    %c0_97 = arith.constant 0 : index
    %c0_98 = arith.constant 0 : index
    %102 = vector.load %arg5[%c0_96, %c0_97, %c0_98] : memref<9x128x128xf32, #tpu.memory_space<vmem>>, vector<1x128x128xf32>
    %103 = vector.shape_cast %102 : vector<1x128x128xf32> to vector<128x128xf32>
    %cst_99 = arith.constant dense<0.000000e+00> : vector<64x128xf32>
    %104 = tpu.matmul %101, %103, %cst_99 {dimension_numbers = #tpu.dot_dimension_numbers<[1], [0], [0], [1], [0, 0, 1, 1], [], []>} : vector<64x128xf32>, vector<128x128xf32>, vector<64x128xf32> -> vector<64x128xf32>
    %105 = vector.extract_strided_slice %99 {offsets = [0, 1, 0], sizes = [4, 16, 128], strides = [1, 1, 1]} : vector<6x24x128xf32> to vector<4x16x128xf32>
    %106 = vector.shape_cast %105 : vector<4x16x128xf32> to vector<64x128xf32>
    %c1_100 = arith.constant 1 : index
    %c0_101 = arith.constant 0 : index
    %c0_102 = arith.constant 0 : index
    %107 = vector.load %arg5[%c1_100, %c0_101, %c0_102] : memref<9x128x128xf32, #tpu.memory_space<vmem>>, vector<1x128x128xf32>
    %108 = vector.shape_cast %107 : vector<1x128x128xf32> to vector<128x128xf32>
    %cst_103 = arith.constant dense<0.000000e+00> : vector<64x128xf32>
    %109 = tpu.matmul %106, %108, %cst_103 {dimension_numbers = #tpu.dot_dimension_numbers<[1], [0], [0], [1], [0, 0, 1, 1], [], []>} : vector<64x128xf32>, vector<128x128xf32>, vector<64x128xf32> -> vector<64x128xf32>
    %110 = arith.addf %104, %109 : vector<64x128xf32>
    %111 = vector.extract_strided_slice %99 {offsets = [0, 2, 0], sizes = [4, 16, 128], strides = [1, 1, 1]} : vector<6x24x128xf32> to vector<4x16x128xf32>
    %112 = vector.shape_cast %111 : vector<4x16x128xf32> to vector<64x128xf32>
    %c2_104 = arith.constant 2 : index
    %c0_105 = arith.constant 0 : index
    %c0_106 = arith.constant 0 : index
    %113 = vector.load %arg5[%c2_104, %c0_105, %c0_106] : memref<9x128x128xf32, #tpu.memory_space<vmem>>, vector<1x128x128xf32>
    %114 = vector.shape_cast %113 : vector<1x128x128xf32> to vector<128x128xf32>
    %cst_107 = arith.constant dense<0.000000e+00> : vector<64x128xf32>
    %115 = tpu.matmul %112, %114, %cst_107 {dimension_numbers = #tpu.dot_dimension_numbers<[1], [0], [0], [1], [0, 0, 1, 1], [], []>} : vector<64x128xf32>, vector<128x128xf32>, vector<64x128xf32> -> vector<64x128xf32>
    %116 = arith.addf %110, %115 : vector<64x128xf32>
    %117 = vector.extract_strided_slice %99 {offsets = [1, 0, 0], sizes = [4, 16, 128], strides = [1, 1, 1]} : vector<6x24x128xf32> to vector<4x16x128xf32>
    %118 = vector.shape_cast %117 : vector<4x16x128xf32> to vector<64x128xf32>
    %c3_108 = arith.constant 3 : index
    %c0_109 = arith.constant 0 : index
    %c0_110 = arith.constant 0 : index
    %119 = vector.load %arg5[%c3_108, %c0_109, %c0_110] : memref<9x128x128xf32, #tpu.memory_space<vmem>>, vector<1x128x128xf32>
    %120 = vector.shape_cast %119 : vector<1x128x128xf32> to vector<128x128xf32>
    %cst_111 = arith.constant dense<0.000000e+00> : vector<64x128xf32>
    %121 = tpu.matmul %118, %120, %cst_111 {dimension_numbers = #tpu.dot_dimension_numbers<[1], [0], [0], [1], [0, 0, 1, 1], [], []>} : vector<64x128xf32>, vector<128x128xf32>, vector<64x128xf32> -> vector<64x128xf32>
    %122 = arith.addf %116, %121 : vector<64x128xf32>
    %123 = vector.extract_strided_slice %99 {offsets = [1, 1, 0], sizes = [4, 16, 128], strides = [1, 1, 1]} : vector<6x24x128xf32> to vector<4x16x128xf32>
    %124 = vector.shape_cast %123 : vector<4x16x128xf32> to vector<64x128xf32>
    %c4_112 = arith.constant 4 : index
    %c0_113 = arith.constant 0 : index
    %c0_114 = arith.constant 0 : index
    %125 = vector.load %arg5[%c4_112, %c0_113, %c0_114] : memref<9x128x128xf32, #tpu.memory_space<vmem>>, vector<1x128x128xf32>
    %126 = vector.shape_cast %125 : vector<1x128x128xf32> to vector<128x128xf32>
    %cst_115 = arith.constant dense<0.000000e+00> : vector<64x128xf32>
    %127 = tpu.matmul %124, %126, %cst_115 {dimension_numbers = #tpu.dot_dimension_numbers<[1], [0], [0], [1], [0, 0, 1, 1], [], []>} : vector<64x128xf32>, vector<128x128xf32>, vector<64x128xf32> -> vector<64x128xf32>
    %128 = arith.addf %122, %127 : vector<64x128xf32>
    %129 = vector.extract_strided_slice %99 {offsets = [1, 2, 0], sizes = [4, 16, 128], strides = [1, 1, 1]} : vector<6x24x128xf32> to vector<4x16x128xf32>
    %130 = vector.shape_cast %129 : vector<4x16x128xf32> to vector<64x128xf32>
    %c5_116 = arith.constant 5 : index
    %c0_117 = arith.constant 0 : index
    %c0_118 = arith.constant 0 : index
    %131 = vector.load %arg5[%c5_116, %c0_117, %c0_118] : memref<9x128x128xf32, #tpu.memory_space<vmem>>, vector<1x128x128xf32>
    %132 = vector.shape_cast %131 : vector<1x128x128xf32> to vector<128x128xf32>
    %cst_119 = arith.constant dense<0.000000e+00> : vector<64x128xf32>
    %133 = tpu.matmul %130, %132, %cst_119 {dimension_numbers = #tpu.dot_dimension_numbers<[1], [0], [0], [1], [0, 0, 1, 1], [], []>} : vector<64x128xf32>, vector<128x128xf32>, vector<64x128xf32> -> vector<64x128xf32>
    %134 = arith.addf %128, %133 : vector<64x128xf32>
    %135 = vector.extract_strided_slice %99 {offsets = [2, 0, 0], sizes = [4, 16, 128], strides = [1, 1, 1]} : vector<6x24x128xf32> to vector<4x16x128xf32>
    %136 = vector.shape_cast %135 : vector<4x16x128xf32> to vector<64x128xf32>
    %c6_120 = arith.constant 6 : index
    %c0_121 = arith.constant 0 : index
    %c0_122 = arith.constant 0 : index
    %137 = vector.load %arg5[%c6_120, %c0_121, %c0_122] : memref<9x128x128xf32, #tpu.memory_space<vmem>>, vector<1x128x128xf32>
    %138 = vector.shape_cast %137 : vector<1x128x128xf32> to vector<128x128xf32>
    %cst_123 = arith.constant dense<0.000000e+00> : vector<64x128xf32>
    %139 = tpu.matmul %136, %138, %cst_123 {dimension_numbers = #tpu.dot_dimension_numbers<[1], [0], [0], [1], [0, 0, 1, 1], [], []>} : vector<64x128xf32>, vector<128x128xf32>, vector<64x128xf32> -> vector<64x128xf32>
    %140 = arith.addf %134, %139 : vector<64x128xf32>
    %141 = vector.extract_strided_slice %99 {offsets = [2, 1, 0], sizes = [4, 16, 128], strides = [1, 1, 1]} : vector<6x24x128xf32> to vector<4x16x128xf32>
    %142 = vector.shape_cast %141 : vector<4x16x128xf32> to vector<64x128xf32>
    %c7_124 = arith.constant 7 : index
    %c0_125 = arith.constant 0 : index
    %c0_126 = arith.constant 0 : index
    %143 = vector.load %arg5[%c7_124, %c0_125, %c0_126] : memref<9x128x128xf32, #tpu.memory_space<vmem>>, vector<1x128x128xf32>
    %144 = vector.shape_cast %143 : vector<1x128x128xf32> to vector<128x128xf32>
    %cst_127 = arith.constant dense<0.000000e+00> : vector<64x128xf32>
    %145 = tpu.matmul %142, %144, %cst_127 {dimension_numbers = #tpu.dot_dimension_numbers<[1], [0], [0], [1], [0, 0, 1, 1], [], []>} : vector<64x128xf32>, vector<128x128xf32>, vector<64x128xf32> -> vector<64x128xf32>
    %146 = arith.addf %140, %145 : vector<64x128xf32>
    %147 = vector.extract_strided_slice %99 {offsets = [2, 2, 0], sizes = [4, 16, 128], strides = [1, 1, 1]} : vector<6x24x128xf32> to vector<4x16x128xf32>
    %148 = vector.shape_cast %147 : vector<4x16x128xf32> to vector<64x128xf32>
    %c8_128 = arith.constant 8 : index
    %c0_129 = arith.constant 0 : index
    %c0_130 = arith.constant 0 : index
    %149 = vector.load %arg5[%c8_128, %c0_129, %c0_130] : memref<9x128x128xf32, #tpu.memory_space<vmem>>, vector<1x128x128xf32>
    %150 = vector.shape_cast %149 : vector<1x128x128xf32> to vector<128x128xf32>
    %cst_131 = arith.constant dense<0.000000e+00> : vector<64x128xf32>
    %151 = tpu.matmul %148, %150, %cst_131 {dimension_numbers = #tpu.dot_dimension_numbers<[1], [0], [0], [1], [0, 0, 1, 1], [], []>} : vector<64x128xf32>, vector<128x128xf32>, vector<64x128xf32> -> vector<64x128xf32>
    %152 = arith.addf %146, %151 : vector<64x128xf32>
    %c0_132 = arith.constant 0 : index
    %c0_133 = arith.constant 0 : index
    %153 = vector.load %arg6[%c0_132, %c0_133] : memref<1x128xf32, #tpu.memory_space<vmem>>, vector<1x128xf32>
    %154 = vector.broadcast %153 : vector<1x128xf32> to vector<64x128xf32>
    %155 = arith.addf %152, %154 : vector<64x128xf32>
    %cst_134 = arith.constant 0.000000e+00 : f32
    %156 = vector.broadcast %cst_134 : f32 to vector<64x128xf32>
    %157 = arith.maximumf %155, %156 : vector<64x128xf32>
    %158 = vector.shape_cast %157 : vector<64x128xf32> to vector<4x16x128xf32>
    %c0_135 = arith.constant 0 : index
    %c0_136 = arith.constant 0 : index
    %c0_137 = arith.constant 0 : index
    %c0_138 = arith.constant 0 : index
    %159 = vector.load %arg7[%c0_135, %c0_136, %c0_137, %c0_138] : memref<1x4x16x128xf32, #tpu.memory_space<vmem>>, vector<1x4x16x128xf32>
    %160 = vector.shape_cast %159 : vector<1x4x16x128xf32> to vector<4x16x128xf32>
    %161 = vector.shape_cast %158 : vector<4x16x128xf32> to vector<1x4x16x128xf32>
    tpu.vector_store %arg7[%c0_135, %c0_136, %c0_137, %c0_138], %161 {strides = array<i32>} : memref<1x4x16x128xf32, #tpu.memory_space<vmem>>, vector<1x4x16x128xf32>,
    return
  }
  func.func @transform_1(%arg0: i32, %arg1: i32) -> (i32, i32, i32) {
    %c0_i32 = arith.constant 0 : i32
    %c0_i32_0 = arith.constant 0 : i32
    %c0_i32_1 = arith.constant 0 : i32
    %c0_i32_2 = arith.constant 0 : i32
    return %c0_i32, %c0_i32_0, %c0_i32_1 : i32, i32, i32
  }
  func.func @transform_2(%arg0: i32, %arg1: i32) -> (i32, i32) {
    %c0_i32 = arith.constant 0 : i32
    %c0_i32_0 = arith.constant 0 : i32
    %c0_i32_1 = arith.constant 0 : i32
    return %c0_i32, %c0_i32_0 : i32, i32
  }
  func.func @transform_3(%arg0: i32, %arg1: i32) -> (i32, i32, i32) {
    %c0_i32 = arith.constant 0 : i32
    %c0_i32_0 = arith.constant 0 : i32
    %c0_i32_1 = arith.constant 0 : i32
    %c0_i32_2 = arith.constant 0 : i32
    return %c0_i32, %c0_i32_0, %c0_i32_1 : i32, i32, i32
  }
  func.func @transform_4(%arg0: i32, %arg1: i32) -> (i32, i32) {
    %c0_i32 = arith.constant 0 : i32
    %c0_i32_0 = arith.constant 0 : i32
    %c0_i32_1 = arith.constant 0 : i32
    return %c0_i32, %c0_i32_0 : i32, i32
  }
  func.func @transform_5(%arg0: i32, %arg1: i32) -> (i32, i32, i32, i32) {
    %c0_i32 = arith.constant 0 : i32
    %c0_i32_0 = arith.constant 0 : i32
    %c0_i32_1 = arith.constant 0 : i32
    return %arg0, %arg1, %c0_i32, %c0_i32_0 : i32, i32, i32, i32
  }
}

</mosaic_0001>

<llo_original>
// kernel: tpu_custom_call.1
$region0: #{tpu_custom_call.1}
  #allocation0 [shape = 'u32[]', space=smem, size = 0x4, offset = 0x4, fixed_abs, tag = 'smem constant byte address 0x4 - core index']
  #allocation1 [shape = 'u32[72,128]{1,0:T(1,128)}', space=vmem, size = 0x9000, scoped, tag = 'internal scratch']
  #allocation2 [shape = 'f32[2,8,32,128]{3,2,1,0:T(8,128)}', space=vmem, size = 0x40000, scoped, tag = 'scratch operand']
  #allocation3 [shape = 's32[2]{0}', space=sflag, size = 0x8, scoped, tag = 'scratch operand']
  #allocation10 [shape = 's32[]', space=sflag, size = 0x4, offset = 0, fixed_abs, tag = 'sflag constant byte address 0x0 - dummy sync flag']
  #allocation11 [shape = 's32[]', space=sflag, size = 0x4, offset = 0, fixed_abs, tag = 'sflag constant byte address 0x0 - dummy sync flag']
  #allocation12 [shape = 'u32[]', space=smem, size = 0x4, offset = 0x44, fixed_abs, tag = 'smem constant byte address 0x44 - assertion arg 0']
  #allocation13 [shape = 'u32[]', space=smem, size = 0x4, offset = 0x48, fixed_abs, tag = 'smem constant byte address 0x48 - assertion arg 1']
  #allocation14 [shape = 's32[]', space=sflag, size = 0x4, offset = 0, fixed_abs, tag = 'sflag constant byte address 0x0 - dummy sync flag']
  #allocation15 [shape = 's32[]', space=sflag, size = 0x4, offset = 0, fixed_abs, tag = 'sflag constant byte address 0x0 - dummy sync flag']
  %s0 = inlined_call_operand.hbm [shape: f32[2,16,32,128], index: 0, kind: input, shape index: {}]
  %s1 = inlined_call_operand.hbm [shape: f32[9,128,128], index: 1, kind: input, shape index: {}]
  %s2 = inlined_call_operand.vmem [shape: f32[1,128], index: 2, kind: input, shape index: {}]
  %s3 = inlined_call_operand.hbm [shape: f32[9,128,128], index: 3, kind: input, shape index: {}]
  %s4 = inlined_call_operand.vmem [shape: f32[1,128], index: 4, kind: input, shape index: {}]
  %s5 = inlined_call_operand.hbm [shape: f32[2,12,16,128], index: 5, kind: output, shape index: {}]
  %s6 = sld [smem:[#allocation0]]
  $region73: #{tpu_custom_call.1} parent=0
    _
  %s8 = ssub.s32 1, %s6
  %s9 = scalar_select 0, %s8, %s6
  $region1: #{tpu_custom_call.1} parent=0
    #allocation4 [shape = 'u8[589824]{0}', space=vmem, size = 0x90000, scoped, tag = 'input window, operand 1, single buffered']
    #allocation5 [shape = 's32[2]{0}', space=sflag, size = 0x8, scoped, tag = 'scoped memory for tpu_custom_call.1']
    #allocation6 [shape = 's32[2]{0}', space=sflag, size = 0x8, scoped, tag = 'scoped memory for tpu_custom_call.1']
    #allocation7 [shape = 'u8[589824]{0}', space=vmem, size = 0x90000, scoped, tag = 'input window, operand 3, single buffered']
    #allocation8 [shape = 's32[1]{0}', space=sflag, size = 0x4, scoped, tag = 'scoped memory for tpu_custom_call.1']
    #allocation9 [shape = 'u8[65536]{0}', space=vmem, size = 0x10000, scoped, tag = 'output window, operand 0']
    %10 = vsyncpa [#allocation5], 0
    %11 = vsyncpa [#allocation8], 0
    %12 = vsyncpa [#allocation6], 0
    %s13 = scalar_lea.sflag [#allocation6], 1
    %14 = vsyncpa %s13, 0
    loop: start=0, step=1, limit=8
    $region2: #{tpu_custom_call.1} parent=1 // loop_pre_header
      _
    $region3: #{tpu_custom_call.1} parent=1 // loop_header
      %s16 = sphi 0, %s20
      %p17 = scmp.ge.s32.totalorder %s16, 8
      %s23 = sphi 0, %s35
      %s24 = sphi 0, %s31
      %s25 = sphi 0, %s23
      %s26 = sphi 0, %s24
      %s27 = sphi 0, %s25
      %s28 = sphi 0, %s26
      %s36 = sphi 0, %s36
      %s38 = sphi 0, %s36
      %s39 = sphi 0, %s38
      %s53 = sphi 0, %s39
      %s57 = sphi 0, %s57
      %s59 = sphi 0, %s57
      %s60 = sphi 0, %s59
      %s74 = sphi 0, %s60
      %s78 = sphi 0, %s78
      %s80 = sphi 0, %s78
      %s81 = sphi 0, %s80
      %s95 = sphi 0, %s81
      %s99 = sphi 0, %s99
      %s101 = sphi 0, %s99
      %s102 = sphi 0, %s101
      %s116 = sphi 0, %s102
      %s124 = sphi 0, %s126
      %s127 = sphi 0, %s124
      %s128 = sphi 0, %s127
      %s144 = sphi 0, %s128
    $region4: #{tpu_custom_call.1} parent=1 // loop_header_branch
      %19 = sbr.rel (%p17) target = $region8
    $region5: #{tpu_custom_call.1} parent=1 // loop_body
      %s21 = ssub.s32 %s16, 1
      %s22 = ssub.s32 %s16, 2
      %s29 = sadd.s32 1, %s24
      %p30 = scmp.ge.s32.totalorder %s29, 3
      %s31 = scalar_select %p30, 0, %s29
      %s32 = sadd.s32 1, %s23
      %s33 = scalar_select %p30, %s32, %s23
      %p34 = scmp.ge.s32.totalorder %s33, 2
      %s35 = scalar_select %p34, 0, %s33
      %s37 = sadd.s32 %s36, 1
      %p40 = scmp.eq.s32.totalorder %s16, 5
      %p41 = scmp.ne.s32.totalorder %s36, %s38
      %p42 = scmp.eq.s32.totalorder %s16, 0
      %p43 = por %p41, %p42
      %p44 = scmp.ne.s32.totalorder %s36, %s38
      %p45 = scmp.eq.s32.totalorder %s21, 5
      %p46 = por %p44, %p45
      %p47 = scmp.ne.s32.totalorder %s38, %s39
      %p48 = scmp.eq.s32.totalorder %s21, 0
      %p49 = por %p47, %p48
      %p50 = scmp.ne.s32.totalorder %s38, %s39
      %p51 = scmp.eq.s32.totalorder %s22, 5
      %p52 = por %p50, %p51
      %p54 = scmp.ne.s32.totalorder %s39, %s53
      %p55 = scmp.eq.s32.totalorder %s22, 0
      %p56 = por %p54, %p55
      %s58 = sadd.s32 %s57, 1
      %p61 = scmp.eq.s32.totalorder %s16, 5
      %p62 = scmp.ne.s32.totalorder %s57, %s59
      %p63 = scmp.eq.s32.totalorder %s16, 0
      %p64 = por %p62, %p63
      %p65 = scmp.ne.s32.totalorder %s57, %s59
      %p66 = scmp.eq.s32.totalorder %s21, 5
      %p67 = por %p65, %p66
      %p68 = scmp.ne.s32.totalorder %s59, %s60
      %p69 = scmp.eq.s32.totalorder %s21, 0
      %p70 = por %p68, %p69
      %p71 = scmp.ne.s32.totalorder %s59, %s60
      %p72 = scmp.eq.s32.totalorder %s22, 5
      %p73 = por %p71, %p72
      %p75 = scmp.ne.s32.totalorder %s60, %s74
      %p76 = scmp.eq.s32.totalorder %s22, 0
      %p77 = por %p75, %p76
      %s79 = sadd.s32 %s78, 1
      %p82 = scmp.eq.s32.totalorder %s16, 5
      %p83 = scmp.ne.s32.totalorder %s78, %s80
      %p84 = scmp.eq.s32.totalorder %s16, 0
      %p85 = por %p83, %p84
      %p86 = scmp.ne.s32.totalorder %s78, %s80
      %p87 = scmp.eq.s32.totalorder %s21, 5
      %p88 = por %p86, %p87
      %p89 = scmp.ne.s32.totalorder %s80, %s81
      %p90 = scmp.eq.s32.totalorder %s21, 0
      %p91 = por %p89, %p90
      %p92 = scmp.ne.s32.totalorder %s80, %s81
      %p93 = scmp.eq.s32.totalorder %s22, 5
      %p94 = por %p92, %p93
      %p96 = scmp.ne.s32.totalorder %s81, %s95
      %p97 = scmp.eq.s32.totalorder %s22, 0
      %p98 = por %p96, %p97
      %s100 = sadd.s32 %s99, 1
      %p103 = scmp.eq.s32.totalorder %s16, 5
      %p104 = scmp.ne.s32.totalorder %s99, %s101
      %p105 = scmp.eq.s32.totalorder %s16, 0
      %p106 = por %p104, %p105
      %p107 = scmp.ne.s32.totalorder %s99, %s101
      %p108 = scmp.eq.s32.totalorder %s21, 5
      %p109 = por %p107, %p108
      %p110 = scmp.ne.s32.totalorder %s101, %s102
      %p111 = scmp.eq.s32.totalorder %s21, 0
      %p112 = por %p110, %p111
      %p113 = scmp.ne.s32.totalorder %s101, %s102
      %p114 = scmp.eq.s32.totalorder %s22, 5
      %p115 = por %p113, %p114
      %p117 = scmp.ne.s32.totalorder %s102, %s116
      %p118 = scmp.eq.s32.totalorder %s22, 0
      %p119 = por %p117, %p118
      %s120 = ssub.s32 %s23, %s35
      %s121 = ssub.s32 %s24, %s31
      %s122 = sor.u32 %s120, %s121
      %p123 = scmp.eq.s32.totalorder %s122, 0
      %s125 = sadd.s32 %s124, 1
      %s126 = scalar_select %p123, %s124, %s125
      %p129 = pneg %p123
      %p130 = scmp.eq.s32.totalorder %s16, 5
      %p131 = por %p129, %p130
      %p132 = scmp.ne.s32.totalorder %s124, %s127
      %p133 = scmp.eq.s32.totalorder %s16, 0
      %p134 = por %p132, %p133
      %p135 = scmp.ne.s32.totalorder %s124, %s127
      %p136 = scmp.eq.s32.totalorder %s21, 5
      %p137 = por %p135, %p136
      %p138 = scmp.ne.s32.totalorder %s127, %s128
      %p139 = scmp.eq.s32.totalorder %s21, 0
      %p140 = por %p138, %p139
      %p141 = scmp.ne.s32.totalorder %s127, %s128
      %p142 = scmp.eq.s32.totalorder %s22, 5
      %p143 = por %p141, %p142
      %p145 = scmp.ne.s32.totalorder %s128, %s144
      %p146 = scmp.eq.s32.totalorder %s22, 0
      %p147 = por %p145, %p146
      %p148 = scmp.le.s32.totalorder 1, %s16
      %p149 = scmp.lt.s32.totalorder %s16, 7
      %p150 = pnand %p148, %p149
      %p151 = pneg %p150
      // Predicated region
      $region9: #{tpu_custom_call.1} parent=5 // pred_check
        _
      $region10: #{tpu_custom_call.1} parent=5 // pred_check_branch
        %153 = sbr.rel (%p150) target = $region12
      $region11: #{tpu_custom_call.1} parent=5 // pred_region
        %s154 = ssub.s32 %s16, 1
        // Predicated region
        $region13: #{tpu_custom_call.1} parent=11 // pred_check
          %p155 = pneg %p49
        $region14: #{tpu_custom_call.1} parent=11 // pred_check_branch
          %157 = sbr.rel (%p155) target = $region16
        $region15: #{tpu_custom_call.1} parent=11 // pred_region
          %159 = vsyncadd [#allocation5], 0
          %s160 = sshll.u32 %s1, 4
          %s161 = int_to_ptr.hbm [resolvable:$true] %s160
          %s162 = sshll.u32 [#allocation4], 4
          %s163 = int_to_ptr.vmem [resolvable:$true] %s162
          %168 = dma.hbm_to_vmem [thread:$0]  %s161, 18432, %s163, [#allocation5], 128, 128, 8
        $region16: #{tpu_custom_call.1} parent=11 // pred_fallthru
          _
        // Predicated region
        $region17: #{tpu_custom_call.1} parent=11 // pred_check
          %p169 = pneg %p70
        $region18: #{tpu_custom_call.1} parent=11 // pred_check_branch
          %171 = sbr.rel (%p169) target = $region20
        $region19: #{tpu_custom_call.1} parent=11 // pred_region
          _
        $region20: #{tpu_custom_call.1} parent=11 // pred_fallthru
          _
        // Predicated region
        $region21: #{tpu_custom_call.1} parent=11 // pred_check
          %p172 = pneg %p91
        $region22: #{tpu_custom_call.1} parent=11 // pred_check_branch
          %174 = sbr.rel (%p172) target = $region24
        $region23: #{tpu_custom_call.1} parent=11 // pred_region
          %176 = vsyncadd [#allocation8], 0
          %s177 = sshll.u32 %s3, 4
          %s178 = int_to_ptr.hbm [resolvable:$true] %s177
          %s179 = sshll.u32 [#allocation7], 4
          %s180 = int_to_ptr.vmem [resolvable:$true] %s179
          %185 = dma.hbm_to_vmem [thread:$0]  %s178, 18432, %s180, [#allocation8], 128, 128, 8
        $region24: #{tpu_custom_call.1} parent=11 // pred_fallthru
          _
        // Predicated region
        $region25: #{tpu_custom_call.1} parent=11 // pred_check
          %p186 = pneg %p112
        $region26: #{tpu_custom_call.1} parent=11 // pred_check_branch
          %188 = sbr.rel (%p186) target = $region28
        $region27: #{tpu_custom_call.1} parent=11 // pred_region
          _
        $region28: #{tpu_custom_call.1} parent=11 // pred_fallthru
          _
      $region12: #{tpu_custom_call.1} parent=5 // pred_fallthru
        _
      %p189 = scmp.lt.s32.totalorder %s16, 6
      // Predicated region
      $region29: #{tpu_custom_call.1} parent=5 // pred_check
        %p190 = pneg %p189
      $region30: #{tpu_custom_call.1} parent=5 // pred_check_branch
        %192 = sbr.rel (%p190) target = $region32
      $region31: #{tpu_custom_call.1} parent=5 // pred_region
        _
      $region32: #{tpu_custom_call.1} parent=5 // pred_fallthru
        _
      %p193 = scmp.le.s32.totalorder 1, %s16
      %p194 = scmp.lt.s32.totalorder %s16, 7
      %p195 = pnand %p193, %p194
      %p196 = pneg %p195
      // Predicated region
      $region33: #{tpu_custom_call.1} parent=5 // pred_check
        _
      $region34: #{tpu_custom_call.1} parent=5 // pred_check_branch
        %198 = sbr.rel (%p195) target = $region36
      $region35: #{tpu_custom_call.1} parent=5 // pred_region
        %s199 = ssub.s32 %s16, 1
        // Predicated region
        $region37: #{tpu_custom_call.1} parent=35 // pred_check
          %p200 = pneg %p49
        $region38: #{tpu_custom_call.1} parent=35 // pred_check_branch
          %202 = sbr.rel (%p200) target = $region40
        $region39: #{tpu_custom_call.1} parent=35 // pred_region
          %204 = dma.done [#allocation5], 18432
        $region40: #{tpu_custom_call.1} parent=35 // pred_fallthru
          _
        // Predicated region
        $region41: #{tpu_custom_call.1} parent=35 // pred_check
          %p205 = pneg %p91
        $region42: #{tpu_custom_call.1} parent=35 // pred_check_branch
          %207 = sbr.rel (%p205) target = $region44
        $region43: #{tpu_custom_call.1} parent=35 // pred_region
          %209 = dma.done [#allocation8], 18432
        $region44: #{tpu_custom_call.1} parent=35 // pred_fallthru
          _
        %p210 = pneg %p49
        %p211 = pneg %p46
        %p212 = pneg %p70
        %p213 = pneg %p67
        %p214 = pneg %p91
        %p215 = pneg %p88
        %p216 = pneg %p112
        %p217 = pneg %p109
        %p218 = pneg %p140
        %p219 = pneg %p137
        %s220 = sand.u32 %s127, 1
        %s221 = scalar_lea.sflag [#allocation6], %s220
        %s222 = sand.u32 %s127, 1
        %s223 = smul.addr %s222, 64
        %s224 = scalar_lea.vmem [#allocation9], %s223
        %s225 = smul.u32 4, %s26
        %p226 = scmp.lt.s32.totalorder %s26, 0
        %s227 = ssub.s32 0, %s26
        %s228 = scalar_select %p226, %s227, %s26
        %s229 = sand.u32 %s228, 1
        %s230 = ssub.s32 0, %s229
        %s231 = scalar_select %p226, %s230, %s229
        %p232 = scmp.ne.s32.totalorder %s231, 0
        %p233 = scmp.lt.s32.totalorder %s231, 0
        %p234 = pnand %p233, %p232
        %p235 = pneg %p234
        %s236 = sadd.s32 %s231, 2
        %s237 = scalar_select %p235, %s236, %s231
        %p238 = scmp.eq.s32.totalorder %s26, 0
        // Predicated region
        $region45: #{tpu_custom_call.1} parent=35 // pred_check
          %p239 = pneg %p238
        $region46: #{tpu_custom_call.1} parent=35 // pred_check_branch
          %241 = sbr.rel (%p239) target = $region48
        $region47: #{tpu_custom_call.1} parent=35 // pred_region
          %s242 = smul.u32 0, 32
          %s243 = smul.u32 %s25, 512
          %s244 = sadd.s32 %s242, %s243
          %s245 = scalar_lea.hbm %s0, %s244
          // Predicated region
          $region49: #{tpu_custom_call.1} parent=47 // pred_check
            _
          $region50: #{tpu_custom_call.1} parent=47 // pred_check_branch
            %247 = sbr.rel target = $region52
          $region51: #{tpu_custom_call.1} parent=47 // pred_region
            %248 = sst [smem:[#allocation12]] [#allocation11]
            %249 = sst [smem:[#allocation13]] [#allocation10]
          $region52: #{tpu_custom_call.1} parent=47 // pred_fallthru
            _
          %251 = shalt.err (0)
          %s253 = sshll.u32 %s245, 4
          %s254 = int_to_ptr.hbm [resolvable:$true] %s253
          %s255 = sshll.u32 [#allocation2], 4
          %s256 = int_to_ptr.vmem [resolvable:$true] %s255
          %258 = dma.hbm_to_vmem [thread:$0]  %s254, 4096, %s256, [#allocation3]
        $region48: #{tpu_custom_call.1} parent=35 // pred_fallthru
          _
        %s259 = sadd.s32 %s26, 1
        %p260 = scmp.lt.s32.totalorder %s259, 3
        // Predicated region
        $region53: #{tpu_custom_call.1} parent=35 // pred_check
          %p261 = pneg %p260
        $region54: #{tpu_custom_call.1} parent=35 // pred_check_branch
          %263 = sbr.rel (%p261) target = $region56
        $region55: #{tpu_custom_call.1} parent=35 // pred_region
          %s264 = ssub.s32 1, %s237
          %s265 = smul.u32 %s259, 4
          %s266 = smul.u32 %s265, 32
          %s267 = smul.u32 %s25, 512
          %s268 = sadd.s32 %s266, %s267
          %s269 = scalar_lea.hbm %s0, %s268
          %s270 = smul.u32 %s264, 256
          %s271 = scalar_lea.vmem [#allocation2], %s270
          %s272 = scalar_lea.sflag [#allocation3], %s264
          // Predicated region
          $region57: #{tpu_custom_call.1} parent=55 // pred_check
            _
          $region58: #{tpu_custom_call.1} parent=55 // pred_check_branch
            %274 = sbr.rel target = $region60
          $region59: #{tpu_custom_call.1} parent=55 // pred_region
            %275 = sst [smem:[#allocation12]] [#allocation15]
            %276 = sst [smem:[#allocation13]] [#allocation14]
          $region60: #{tpu_custom_call.1} parent=55 // pred_fallthru
            _
          %278 = shalt.err (0)
          %s280 = sshll.u32 %s269, 4
          %s281 = int_to_ptr.hbm [resolvable:$true] %s280
          %s282 = sshll.u32 %s271, 4
          %s283 = int_to_ptr.vmem [resolvable:$true] %s282
          %285 = dma.hbm_to_vmem [thread:$0]  %s281, 4096, %s283, %s272
        $region56: #{tpu_custom_call.1} parent=35 // pred_fallthru
          _
        %s286 = smul.u32 %s237, 256
        %s287 = scalar_lea.vmem [#allocation2], %s286
        %s288 = scalar_lea.sflag [#allocation3], %s237
        %s289 = smul.u32 8, 32
        %s290 = smul.u32 %s289, 1
        %s291 = sshll.u32 %s290, 4
        %292 = dma.done %s288, %s291
        %v293 = vld [vmem:[%s287] sm:$0xff]
        %v294 = vld [vmem:[%s287 + $0x8] sm:$0xff]
        %v295 = vld [vmem:[%s287 + $0x10] sm:$0xff]
        %v296 = vld [vmem:[%s287 + $0x20] sm:$0xff]
        %v297 = vld [vmem:[%s287 + $0x28] sm:$0xff]
        %v298 = vld [vmem:[%s287 + $0x30] sm:$0xff]
        %v299 = vld [vmem:[%s287 + $0x40] sm:$0xff]
        %v300 = vld [vmem:[%s287 + $0x48] sm:$0xff]
        %v301 = vld [vmem:[%s287 + $0x50] sm:$0xff]
        %v302 = vld [vmem:[%s287 + $0x60] sm:$0xff]
        %v303 = vld [vmem:[%s287 + $0x68] sm:$0xff]
        %v304 = vld [vmem:[%s287 + $0x70] sm:$0xff]
        %v305 = vld [vmem:[%s287 + $0x80] sm:$0xff]
        %v306 = vld [vmem:[%s287 + $0x88] sm:$0xff]
        %v307 = vld [vmem:[%s287 + $0x90] sm:$0xff]
        %v308 = vld [vmem:[%s287 + $0xa0] sm:$0xff]
        %v309 = vld [vmem:[%s287 + $0xa8] sm:$0xff]
        %v310 = vld [vmem:[%s287 + $0xb0] sm:$0xff]
        %v311 = vld [vmem:[#allocation4] sm:$0xff]
        %v312 = vld [vmem:[#allocation4 + $0x8] sm:$0xff]
        %v313 = vld [vmem:[#allocation4 + $0x10] sm:$0xff]
        %v314 = vld [vmem:[#allocation4 + $0x18] sm:$0xff]
        %v315 = vld [vmem:[#allocation4 + $0x20] sm:$0xff]
        %v316 = vld [vmem:[#allocation4 + $0x28] sm:$0xff]
        %v317 = vld [vmem:[#allocation4 + $0x30] sm:$0xff]
        %v318 = vld [vmem:[#allocation4 + $0x38] sm:$0xff]
        %v319 = vld [vmem:[#allocation4 + $0x40] sm:$0xff]
        %v320 = vld [vmem:[#allocation4 + $0x48] sm:$0xff]
        %v321 = vld [vmem:[#allocation4 + $0x50] sm:$0xff]
        %v322 = vld [vmem:[#allocation4 + $0x58] sm:$0xff]
        %v323 = vld [vmem:[#allocation4 + $0x60] sm:$0xff]
        %v324 = vld [vmem:[#allocation4 + $0x68] sm:$0xff]
        %v325 = vld [vmem:[#allocation4 + $0x70] sm:$0xff]
        %v326 = vld [vmem:[#allocation4 + $0x78] sm:$0xff]
        %v327 = vld [vmem:[%s287 + $0x1] sm:$0xff]
        %v328 = vld [vmem:[%s287 + $0x9] sm:$0xff]
        %v329 = vld [vmem:[%s287 + $0x11] sm:$0xff]
        %v330 = vld [vmem:[%s287 + $0x21] sm:$0xff]
        %v331 = vld [vmem:[%s287 + $0x29] sm:$0xff]
        %v332 = vld [vmem:[%s287 + $0x31] sm:$0xff]
        %v333 = vld [vmem:[%s287 + $0x41] sm:$0xff]
        %v334 = vld [vmem:[%s287 + $0x49] sm:$0xff]
        %v335 = vld [vmem:[%s287 + $0x51] sm:$0xff]
        %v336 = vld [vmem:[%s287 + $0x61] sm:$0xff]
        %v337 = vld [vmem:[%s287 + $0x69] sm:$0xff]
        %v338 = vld [vmem:[%s287 + $0x71] sm:$0xff]
        %v339 = vld [vmem:[%s287 + $0x81] sm:$0xff]
        %v340 = vld [vmem:[%s287 + $0x89] sm:$0xff]
        %v341 = vld [vmem:[%s287 + $0x91] sm:$0xff]
        %v342 = vld [vmem:[%s287 + $0xa1] sm:$0xff]
        %v343 = vld [vmem:[%s287 + $0xa9] sm:$0xff]
        %v344 = vld [vmem:[%s287 + $0xb1] sm:$0xff]
        %s345 = scalar_lea.vmem [#allocation4], 128
        %v346 = vld [vmem:[%s345] sm:$0xff]
        %v347 = vld [vmem:[%s345 + $0x8] sm:$0xff]
        %v348 = vld [vmem:[%s345 + $0x10] sm:$0xff]
        %v349 = vld [vmem:[%s345 + $0x18] sm:$0xff]
        %v350 = vld [vmem:[%s345 + $0x20] sm:$0xff]
        %v351 = vld [vmem:[%s345 + $0x28] sm:$0xff]
        %v352 = vld [vmem:[%s345 + $0x30] sm:$0xff]
        %v353 = vld [vmem:[%s345 + $0x38] sm:$0xff]
        %v354 = vld [vmem:[%s345 + $0x40] sm:$0xff]
        %v355 = vld [vmem:[%s345 + $0x48] sm:$0xff]
        %v356 = vld [vmem:[%s345 + $0x50] sm:$0xff]
        %v357 = vld [vmem:[%s345 + $0x58] sm:$0xff]
        %v358 = vld [vmem:[%s345 + $0x60] sm:$0xff]
        %v359 = vld [vmem:[%s345 + $0x68] sm:$0xff]
        %v360 = vld [vmem:[%s345 + $0x70] sm:$0xff]
        %v361 = vld [vmem:[%s345 + $0x78] sm:$0xff]
        %362 = vmatpush.msra.mxu0 %v361
        %363 = vmatpush.msra.mxu0 %v360
        %364 = vmatpush.msra.mxu0 %v359
        %365 = vmatpush.msra.mxu0 %v358
        %366 = vmatpush.msra.mxu0 %v357
        %367 = vmatpush.msra.mxu0 %v356
        %368 = vmatpush.msra.mxu0 %v355
        %369 = vmatpush.msra.mxu0 %v354
        %370 = vmatpush.msra.mxu0 %v353
        %371 = vmatpush.msra.mxu0 %v352
        %372 = vmatpush.msra.mxu0 %v351
        %373 = vmatpush.msra.mxu0 %v350
        %374 = vmatpush.msra.mxu0 %v349
        %375 = vmatpush.msra.mxu0 %v348
        %376 = vmatpush.msra.mxu0 %v347
        %377 = vmatpush.msra.mxu0 %v346
        %378 = vmatmul.f32.gmra.mxu0 %v327
        %v379 = vpop.f32.mrf.mxu0
        %v380 = vadd.f32 0.0, %v379
        %381 = vmatmul.f32.gmra.mxu0 %v328
        %v382 = vpop.f32.mrf.mxu0
        %v383 = vadd.f32 0.0, %v382
        %384 = vmatmul.f32.gmra.mxu0 %v329
        %v385 = vpop.f32.mrf.mxu0
        %v386 = vadd.f32 0.0, %v385
        %387 = vmatmul.f32.gmra.mxu0 %v330
        %v388 = vpop.f32.mrf.mxu0
        %v389 = vadd.f32 0.0, %v388
        %390 = vmatmul.f32.gmra.mxu0 %v331
        %v391 = vpop.f32.mrf.mxu0
        %v392 = vadd.f32 0.0, %v391
        %393 = vmatmul.f32.gmra.mxu0 %v332
        %v394 = vpop.f32.mrf.mxu0
        %v395 = vadd.f32 0.0, %v394
        %396 = vmatmul.f32.gmra.mxu0 %v333
        %v397 = vpop.f32.mrf.mxu0
        %v398 = vadd.f32 0.0, %v397
        %399 = vmatmul.f32.gmra.mxu0 %v334
        %v400 = vpop.f32.mrf.mxu0
        %v401 = vadd.f32 0.0, %v400
        %402 = vmatmul.f32.gmra.mxu0 %v335
        %v403 = vpop.f32.mrf.mxu0
        %v404 = vadd.f32 0.0, %v403
        %405 = vmatmul.f32.gmra.mxu0 %v336
        %v406 = vpop.f32.mrf.mxu0
        %v407 = vadd.f32 0.0, %v406
        %408 = vmatmul.f32.gmra.mxu0 %v337
        %v409 = vpop.f32.mrf.mxu0
        %v410 = vadd.f32 0.0, %v409
        %411 = vmatmul.f32.gmra.mxu0 %v338
        %v412 = vpop.f32.mrf.mxu0
        %v413 = vadd.f32 0.0, %v412
        %414 = vmatmul.f32.gmra.mxu0 %v339
        %v415 = vpop.f32.mrf.mxu0
        %v416 = vadd.f32 0.0, %v415
        %417 = vmatmul.f32.gmra.mxu0 %v340
        %v418 = vpop.f32.mrf.mxu0
        %v419 = vadd.f32 0.0, %v418
        %420 = vmatmul.f32.gmra.mxu0 %v341
        %v421 = vpop.f32.mrf.mxu0
        %v422 = vadd.f32 0.0, %v421
        %423 = vmatmul.f32.gmra.mxu0 %v342
        %v424 = vpop.f32.mrf.mxu0
        %v425 = vadd.f32 0.0, %v424
        %426 = vmatmul.f32.gmra.mxu0 %v343
        %v427 = vpop.f32.mrf.mxu0
        %v428 = vadd.f32 0.0, %v427
        %429 = vmatmul.f32.gmra.mxu0 %v344
        %v430 = vpop.f32.mrf.mxu0
        %v431 = vadd.f32 0.0, %v430
        %432 = vdwg.mxu0
        %433 = vmatpush.msra.mxu0 %v326
        %434 = vmatpush.msra.mxu0 %v325
        %435 = vmatpush.msra.mxu0 %v324
        %436 = vmatpush.msra.mxu0 %v323
        %437 = vmatpush.msra.mxu0 %v322
        %438 = vmatpush.msra.mxu0 %v321
        %439 = vmatpush.msra.mxu0 %v320
        %440 = vmatpush.msra.mxu0 %v319
        %441 = vmatpush.msra.mxu0 %v318
        %442 = vmatpush.msra.mxu0 %v317
        %443 = vmatpush.msra.mxu0 %v316
        %444 = vmatpush.msra.mxu0 %v315
        %445 = vmatpush.msra.mxu0 %v314
        %446 = vmatpush.msra.mxu0 %v313
        %447 = vmatpush.msra.mxu0 %v312
        %448 = vmatpush.msra.mxu0 %v311
        %449 = vmatmul.f32.gmra.mxu0 %v293
        %v450 = vpop.f32.mrf.mxu0
        %v451 = vadd.f32 %v380, %v450
        %452 = vmatmul.f32.gmra.mxu0 %v294
        %v453 = vpop.f32.mrf.mxu0
        %v454 = vadd.f32 %v383, %v453
        %455 = vmatmul.f32.gmra.mxu0 %v295
        %v456 = vpop.f32.mrf.mxu0
        %v457 = vadd.f32 %v386, %v456
        %458 = vmatmul.f32.gmra.mxu0 %v296
        %v459 = vpop.f32.mrf.mxu0
        %v460 = vadd.f32 %v389, %v459
        %461 = vmatmul.f32.gmra.mxu0 %v297
        %v462 = vpop.f32.mrf.mxu0
        %v463 = vadd.f32 %v392, %v462
        %464 = vmatmul.f32.gmra.mxu0 %v298
        %v465 = vpop.f32.mrf.mxu0
        %v466 = vadd.f32 %v395, %v465
        %467 = vmatmul.f32.gmra.mxu0 %v299
        %v468 = vpop.f32.mrf.mxu0
        %v469 = vadd.f32 %v398, %v468
        %470 = vmatmul.f32.gmra.mxu0 %v300
        %v471 = vpop.f32.mrf.mxu0
        %v472 = vadd.f32 %v401, %v471
        %473 = vmatmul.f32.gmra.mxu0 %v301
        %v474 = vpop.f32.mrf.mxu0
        %v475 = vadd.f32 %v404, %v474
        %476 = vmatmul.f32.gmra.mxu0 %v302
        %v477 = vpop.f32.mrf.mxu0
        %v478 = vadd.f32 %v407, %v477
        %479 = vmatmul.f32.gmra.mxu0 %v303
        %v480 = vpop.f32.mrf.mxu0
        %v481 = vadd.f32 %v410, %v480
        %482 = vmatmul.f32.gmra.mxu0 %v304
        %v483 = vpop.f32.mrf.mxu0
        %v484 = vadd.f32 %v413, %v483
        %485 = vmatmul.f32.gmra.mxu0 %v305
        %v486 = vpop.f32.mrf.mxu0
        %v487 = vadd.f32 %v416, %v486
        %488 = vmatmul.f32.gmra.mxu0 %v306
        %v489 = vpop.f32.mrf.mxu0
        %v490 = vadd.f32 %v419, %v489
        %491 = vmatmul.f32.gmra.mxu0 %v307
        %v492 = vpop.f32.mrf.mxu0
        %v493 = vadd.f32 %v422, %v492
        %494 = vmatmul.f32.gmra.mxu0 %v308
        %v495 = vpop.f32.mrf.mxu0
        %v496 = vadd.f32 %v425, %v495
        %497 = vmatmul.f32.gmra.mxu0 %v309
        %v498 = vpop.f32.mrf.mxu0
        %v499 = vadd.f32 %v428, %v498
        %500 = vmatmul.f32.gmra.mxu0 %v310
        %v501 = vpop.f32.mrf.mxu0
        %v502 = vadd.f32 %v431, %v501
        %503 = vdwg.mxu0
        %v504 = vld [vmem:[%s287 + $0x2] sm:$0xff]
        %v505 = vld [vmem:[%s287 + $0xa] sm:$0xff]
        %v506 = vld [vmem:[%s287 + $0x12] sm:$0xff]
        %v507 = vld [vmem:[%s287 + $0x22] sm:$0xff]
        %v508 = vld [vmem:[%s287 + $0x2a] sm:$0xff]
        %v509 = vld [vmem:[%s287 + $0x32] sm:$0xff]
        %v510 = vld [vmem:[%s287 + $0x42] sm:$0xff]
        %v511 = vld [vmem:[%s287 + $0x4a] sm:$0xff]
        %v512 = vld [vmem:[%s287 + $0x52] sm:$0xff]
        %v513 = vld [vmem:[%s287 + $0x62] sm:$0xff]
        %v514 = vld [vmem:[%s287 + $0x6a] sm:$0xff]
        %v515 = vld [vmem:[%s287 + $0x72] sm:$0xff]
        %v516 = vld [vmem:[%s287 + $0x82] sm:$0xff]
        %v517 = vld [vmem:[%s287 + $0x8a] sm:$0xff]
        %v518 = vld [vmem:[%s287 + $0x92] sm:$0xff]
        %v519 = vld [vmem:[%s287 + $0xa2] sm:$0xff]
        %v520 = vld [vmem:[%s287 + $0xaa] sm:$0xff]
        %v521 = vld [vmem:[%s287 + $0xb2] sm:$0xff]
        %s522 = scalar_lea.vmem [#allocation4], 256
        %v523 = vld [vmem:[%s522] sm:$0xff]
        %v524 = vld [vmem:[%s522 + $0x8] sm:$0xff]
        %v525 = vld [vmem:[%s522 + $0x10] sm:$0xff]
        %v526 = vld [vmem:[%s522 + $0x18] sm:$0xff]
        %v527 = vld [vmem:[%s522 + $0x20] sm:$0xff]
        %v528 = vld [vmem:[%s522 + $0x28] sm:$0xff]
        %v529 = vld [vmem:[%s522 + $0x30] sm:$0xff]
        %v530 = vld [vmem:[%s522 + $0x38] sm:$0xff]
        %v531 = vld [vmem:[%s522 + $0x40] sm:$0xff]
        %v532 = vld [vmem:[%s522 + $0x48] sm:$0xff]
        %v533 = vld [vmem:[%s522 + $0x50] sm:$0xff]
        %v534 = vld [vmem:[%s522 + $0x58] sm:$0xff]
        %v535 = vld [vmem:[%s522 + $0x60] sm:$0xff]
        %v536 = vld [vmem:[%s522 + $0x68] sm:$0xff]
        %v537 = vld [vmem:[%s522 + $0x70] sm:$0xff]
        %v538 = vld [vmem:[%s522 + $0x78] sm:$0xff]
        %539 = vmatpush.msra.mxu0 %v538
        %540 = vmatpush.msra.mxu0 %v537
        %541 = vmatpush.msra.mxu0 %v536
        %542 = vmatpush.msra.mxu0 %v535
        %543 = vmatpush.msra.mxu0 %v534
        %544 = vmatpush.msra.mxu0 %v533
        %545 = vmatpush.msra.mxu0 %v532
        %546 = vmatpush.msra.mxu0 %v531
        %547 = vmatpush.msra.mxu0 %v530
        %548 = vmatpush.msra.mxu0 %v529
        %549 = vmatpush.msra.mxu0 %v528
        %550 = vmatpush.msra.mxu0 %v527
        %551 = vmatpush.msra.mxu0 %v526
        %552 = vmatpush.msra.mxu0 %v525
        %553 = vmatpush.msra.mxu0 %v524
        %554 = vmatpush.msra.mxu0 %v523
        %555 = vmatmul.f32.gmra.mxu0 %v504
        %v556 = vpop.f32.mrf.mxu0
        %v557 = vadd.f32 0.0, %v556
        %558 = vmatmul.f32.gmra.mxu0 %v505
        %v559 = vpop.f32.mrf.mxu0
        %v560 = vadd.f32 0.0, %v559
        %561 = vmatmul.f32.gmra.mxu0 %v506
        %v562 = vpop.f32.mrf.mxu0
        %v563 = vadd.f32 0.0, %v562
        %564 = vmatmul.f32.gmra.mxu0 %v507
        %v565 = vpop.f32.mrf.mxu0
        %v566 = vadd.f32 0.0, %v565
        %567 = vmatmul.f32.gmra.mxu0 %v508
        %v568 = vpop.f32.mrf.mxu0
        %v569 = vadd.f32 0.0, %v568
        %570 = vmatmul.f32.gmra.mxu0 %v509
        %v571 = vpop.f32.mrf.mxu0
        %v572 = vadd.f32 0.0, %v571
        %573 = vmatmul.f32.gmra.mxu0 %v510
        %v574 = vpop.f32.mrf.mxu0
        %v575 = vadd.f32 0.0, %v574
        %576 = vmatmul.f32.gmra.mxu0 %v511
        %v577 = vpop.f32.mrf.mxu0
        %v578 = vadd.f32 0.0, %v577
        %579 = vmatmul.f32.gmra.mxu0 %v512
        %v580 = vpop.f32.mrf.mxu0
        %v581 = vadd.f32 0.0, %v580
        %582 = vmatmul.f32.gmra.mxu0 %v513
        %v583 = vpop.f32.mrf.mxu0
        %v584 = vadd.f32 0.0, %v583
        %585 = vmatmul.f32.gmra.mxu0 %v514
        %v586 = vpop.f32.mrf.mxu0
        %v587 = vadd.f32 0.0, %v586
        %588 = vmatmul.f32.gmra.mxu0 %v515
        %v589 = vpop.f32.mrf.mxu0
        %v590 = vadd.f32 0.0, %v589
        %591 = vmatmul.f32.gmra.mxu0 %v516
        %v592 = vpop.f32.mrf.mxu0
        %v593 = vadd.f32 0.0, %v592
        %594 = vmatmul.f32.gmra.mxu0 %v517
        %v595 = vpop.f32.mrf.mxu0
        %v596 = vadd.f32 0.0, %v595
        %597 = vmatmul.f32.gmra.mxu0 %v518
        %v598 = vpop.f32.mrf.mxu0
        %v599 = vadd.f32 0.0, %v598
        %600 = vmatmul.f32.gmra.mxu0 %v519
        %v601 = vpop.f32.mrf.mxu0
        %v602 = vadd.f32 0.0, %v601
        %603 = vmatmul.f32.gmra.mxu0 %v520
        %v604 = vpop.f32.mrf.mxu0
        %v605 = vadd.f32 0.0, %v604
        %606 = vmatmul.f32.gmra.mxu0 %v521
        %v607 = vpop.f32.mrf.mxu0
        %v608 = vadd.f32 0.0, %v607
        %609 = vdwg.mxu0
        %v610 = vadd.f32 %v451, %v557
        %v611 = vadd.f32 %v454, %v560
        %v612 = vadd.f32 %v457, %v563
        %v613 = vadd.f32 %v460, %v566
        %v614 = vadd.f32 %v463, %v569
        %v615 = vadd.f32 %v466, %v572
        %v616 = vadd.f32 %v469, %v575
        %v617 = vadd.f32 %v472, %v578
        %v618 = vadd.f32 %v475, %v581
        %v619 = vadd.f32 %v478, %v584
        %v620 = vadd.f32 %v481, %v587
        %v621 = vadd.f32 %v484, %v590
        %v622 = vadd.f32 %v487, %v593
        %v623 = vadd.f32 %v490, %v596
        %v624 = vadd.f32 %v493, %v599
        %v625 = vadd.f32 %v496, %v602
        %v626 = vadd.f32 %v499, %v605
        %v627 = vadd.f32 %v502, %v608
        %s628 = scalar_lea.vmem %s287, 32 [#allocation2]
        %v629 = vld [vmem:[%s628] sm:$0xff]
        %v630 = vld [vmem:[%s628 + $0x8] sm:$0xff]
        %v631 = vld [vmem:[%s628 + $0x10] sm:$0xff]
        %v632 = vld [vmem:[%s628 + $0x20] sm:$0xff]
        %v633 = vld [vmem:[%s628 + $0x28] sm:$0xff]
        %v634 = vld [vmem:[%s628 + $0x30] sm:$0xff]
        %v635 = vld [vmem:[%s628 + $0x40] sm:$0xff]
        %v636 = vld [vmem:[%s628 + $0x48] sm:$0xff]
        %v637 = vld [vmem:[%s628 + $0x50] sm:$0xff]
        %v638 = vld [vmem:[%s628 + $0x60] sm:$0xff]
        %v639 = vld [vmem:[%s628 + $0x68] sm:$0xff]
        %v640 = vld [vmem:[%s628 + $0x70] sm:$0xff]
        %v641 = vld [vmem:[%s628 + $0x80] sm:$0xff]
        %v642 = vld [vmem:[%s628 + $0x88] sm:$0xff]
        %v643 = vld [vmem:[%s628 + $0x90] sm:$0xff]
        %v644 = vld [vmem:[%s628 + $0xa0] sm:$0xff]
        %v645 = vld [vmem:[%s628 + $0xa8] sm:$0xff]
        %v646 = vld [vmem:[%s628 + $0xb0] sm:$0xff]
        %s647 = scalar_lea.vmem [#allocation4], 384
        %v648 = vld [vmem:[%s647] sm:$0xff]
        %v649 = vld [vmem:[%s647 + $0x8] sm:$0xff]
        %v650 = vld [vmem:[%s647 + $0x10] sm:$0xff]
        %v651 = vld [vmem:[%s647 + $0x18] sm:$0xff]
        %v652 = vld [vmem:[%s647 + $0x20] sm:$0xff]
        %v653 = vld [vmem:[%s647 + $0x28] sm:$0xff]
        %v654 = vld [vmem:[%s647 + $0x30] sm:$0xff]
        %v655 = vld [vmem:[%s647 + $0x38] sm:$0xff]
        %v656 = vld [vmem:[%s647 + $0x40] sm:$0xff]
        %v657 = vld [vmem:[%s647 + $0x48] sm:$0xff]
        %v658 = vld [vmem:[%s647 + $0x50] sm:$0xff]
        %v659 = vld [vmem:[%s647 + $0x58] sm:$0xff]
        %v660 = vld [vmem:[%s647 + $0x60] sm:$0xff]
        %v661 = vld [vmem:[%s647 + $0x68] sm:$0xff]
        %v662 = vld [vmem:[%s647 + $0x70] sm:$0xff]
        %v663 = vld [vmem:[%s647 + $0x78] sm:$0xff]
        %664 = vmatpush.msra.mxu0 %v663
        %665 = vmatpush.msra.mxu0 %v662
        %666 = vmatpush.msra.mxu0 %v661
        %667 = vmatpush.msra.mxu0 %v660
        %668 = vmatpush.msra.mxu0 %v659
        %669 = vmatpush.msra.mxu0 %v658
        %670 = vmatpush.msra.mxu0 %v657
        %671 = vmatpush.msra.mxu0 %v656
        %672 = vmatpush.msra.mxu0 %v655
        %673 = vmatpush.msra.mxu0 %v654
        %674 = vmatpush.msra.mxu0 %v653
        %675 = vmatpush.msra.mxu0 %v652
        %676 = vmatpush.msra.mxu0 %v651
        %677 = vmatpush.msra.mxu0 %v650
        %678 = vmatpush.msra.mxu0 %v649
        %679 = vmatpush.msra.mxu0 %v648
        %680 = vmatmul.f32.gmra.mxu0 %v629
        %v681 = vpop.f32.mrf.mxu0
        %v682 = vadd.f32 0.0, %v681
        %683 = vmatmul.f32.gmra.mxu0 %v630
        %v684 = vpop.f32.mrf.mxu0
        %v685 = vadd.f32 0.0, %v684
        %686 = vmatmul.f32.gmra.mxu0 %v631
        %v687 = vpop.f32.mrf.mxu0
        %v688 = vadd.f32 0.0, %v687
        %689 = vmatmul.f32.gmra.mxu0 %v632
        %v690 = vpop.f32.mrf.mxu0
        %v691 = vadd.f32 0.0, %v690
        %692 = vmatmul.f32.gmra.mxu0 %v633
        %v693 = vpop.f32.mrf.mxu0
        %v694 = vadd.f32 0.0, %v693
        %695 = vmatmul.f32.gmra.mxu0 %v634
        %v696 = vpop.f32.mrf.mxu0
        %v697 = vadd.f32 0.0, %v696
        %698 = vmatmul.f32.gmra.mxu0 %v635
        %v699 = vpop.f32.mrf.mxu0
        %v700 = vadd.f32 0.0, %v699
        %701 = vmatmul.f32.gmra.mxu0 %v636
        %v702 = vpop.f32.mrf.mxu0
        %v703 = vadd.f32 0.0, %v702
        %704 = vmatmul.f32.gmra.mxu0 %v637
        %v705 = vpop.f32.mrf.mxu0
        %v706 = vadd.f32 0.0, %v705
        %707 = vmatmul.f32.gmra.mxu0 %v638
        %v708 = vpop.f32.mrf.mxu0
        %v709 = vadd.f32 0.0, %v708
        %710 = vmatmul.f32.gmra.mxu0 %v639
        %v711 = vpop.f32.mrf.mxu0
        %v712 = vadd.f32 0.0, %v711
        %713 = vmatmul.f32.gmra.mxu0 %v640
        %v714 = vpop.f32.mrf.mxu0
        %v715 = vadd.f32 0.0, %v714
        %716 = vmatmul.f32.gmra.mxu0 %v641
        %v717 = vpop.f32.mrf.mxu0
        %v718 = vadd.f32 0.0, %v717
        %719 = vmatmul.f32.gmra.mxu0 %v642
        %v720 = vpop.f32.mrf.mxu0
        %v721 = vadd.f32 0.0, %v720
        %722 = vmatmul.f32.gmra.mxu0 %v643
        %v723 = vpop.f32.mrf.mxu0
        %v724 = vadd.f32 0.0, %v723
        %725 = vmatmul.f32.gmra.mxu0 %v644
        %v726 = vpop.f32.mrf.mxu0
        %v727 = vadd.f32 0.0, %v726
        %728 = vmatmul.f32.gmra.mxu0 %v645
        %v729 = vpop.f32.mrf.mxu0
        %v730 = vadd.f32 0.0, %v729
        %731 = vmatmul.f32.gmra.mxu0 %v646
        %v732 = vpop.f32.mrf.mxu0
        %v733 = vadd.f32 0.0, %v732
        %734 = vdwg.mxu0
        %v735 = vadd.f32 %v610, %v682
        %v736 = vadd.f32 %v611, %v685
        %v737 = vadd.f32 %v612, %v688
        %v738 = vadd.f32 %v613, %v691
        %v739 = vadd.f32 %v614, %v694
        %v740 = vadd.f32 %v615, %v697
        %v741 = vadd.f32 %v616, %v700
        %v742 = vadd.f32 %v617, %v703
        %v743 = vadd.f32 %v618, %v706
        %v744 = vadd.f32 %v619, %v709
        %v745 = vadd.f32 %v620, %v712
        %v746 = vadd.f32 %v621, %v715
        %v747 = vadd.f32 %v622, %v718
        %v748 = vadd.f32 %v623, %v721
        %v749 = vadd.f32 %v624, %v724
        %v750 = vadd.f32 %v625, %v727
        %v751 = vadd.f32 %v626, %v730
        %v752 = vadd.f32 %v627, %v733
        %v753 = vld [vmem:[%s628 + $0x1] sm:$0xff]
        %v754 = vld [vmem:[%s628 + $0x9] sm:$0xff]
        %v755 = vld [vmem:[%s628 + $0x11] sm:$0xff]
        %v756 = vld [vmem:[%s628 + $0x21] sm:$0xff]
        %v757 = vld [vmem:[%s628 + $0x29] sm:$0xff]
        %v758 = vld [vmem:[%s628 + $0x31] sm:$0xff]
        %v759 = vld [vmem:[%s628 + $0x41] sm:$0xff]
        %v760 = vld [vmem:[%s628 + $0x49] sm:$0xff]
        %v761 = vld [vmem:[%s628 + $0x51] sm:$0xff]
        %v762 = vld [vmem:[%s628 + $0x61] sm:$0xff]
        %v763 = vld [vmem:[%s628 + $0x69] sm:$0xff]
        %v764 = vld [vmem:[%s628 + $0x71] sm:$0xff]
        %v765 = vld [vmem:[%s628 + $0x81] sm:$0xff]
        %v766 = vld [vmem:[%s628 + $0x89] sm:$0xff]
        %v767 = vld [vmem:[%s628 + $0x91] sm:$0xff]
        %v768 = vld [vmem:[%s628 + $0xa1] sm:$0xff]
        %v769 = vld [vmem:[%s628 + $0xa9] sm:$0xff]
        %v770 = vld [vmem:[%s628 + $0xb1] sm:$0xff]
        %s771 = scalar_lea.vmem [#allocation4], 512
        %v772 = vld [vmem:[%s771] sm:$0xff]
        %v773 = vld [vmem:[%s771 + $0x8] sm:$0xff]
        %v774 = vld [vmem:[%s771 + $0x10] sm:$0xff]
        %v775 = vld [vmem:[%s771 + $0x18] sm:$0xff]
        %v776 = vld [vmem:[%s771 + $0x20] sm:$0xff]
        %v777 = vld [vmem:[%s771 + $0x28] sm:$0xff]
        %v778 = vld [vmem:[%s771 + $0x30] sm:$0xff]
        %v779 = vld [vmem:[%s771 + $0x38] sm:$0xff]
        %v780 = vld [vmem:[%s771 + $0x40] sm:$0xff]
        %v781 = vld [vmem:[%s771 + $0x48] sm:$0xff]
        %v782 = vld [vmem:[%s771 + $0x50] sm:$0xff]
        %v783 = vld [vmem:[%s771 + $0x58] sm:$0xff]
        %v784 = vld [vmem:[%s771 + $0x60] sm:$0xff]
        %v785 = vld [vmem:[%s771 + $0x68] sm:$0xff]
        %v786 = vld [vmem:[%s771 + $0x70] sm:$0xff]
        %v787 = vld [vmem:[%s771 + $0x78] sm:$0xff]
        %788 = vmatpush.msra.mxu0 %v787
        %789 = vmatpush.msra.mxu0 %v786
        %790 = vmatpush.msra.mxu0 %v785
        %791 = vmatpush.msra.mxu0 %v784
        %792 = vmatpush.msra.mxu0 %v783
        %793 = vmatpush.msra.mxu0 %v782
        %794 = vmatpush.msra.mxu0 %v781
        %795 = vmatpush.msra.mxu0 %v780
        %796 = vmatpush.msra.mxu0 %v779
        %797 = vmatpush.msra.mxu0 %v778
        %798 = vmatpush.msra.mxu0 %v777
        %799 = vmatpush.msra.mxu0 %v776
        %800 = vmatpush.msra.mxu0 %v775
        %801 = vmatpush.msra.mxu0 %v774
        %802 = vmatpush.msra.mxu0 %v773
        %803 = vmatpush.msra.mxu0 %v772
        %804 = vmatmul.f32.gmra.mxu0 %v753
        %v805 = vpop.f32.mrf.mxu0
        %v806 = vadd.f32 0.0, %v805
        %807 = vmatmul.f32.gmra.mxu0 %v754
        %v808 = vpop.f32.mrf.mxu0
        %v809 = vadd.f32 0.0, %v808
        %810 = vmatmul.f32.gmra.mxu0 %v755
        %v811 = vpop.f32.mrf.mxu0
        %v812 = vadd.f32 0.0, %v811
        %813 = vmatmul.f32.gmra.mxu0 %v756
        %v814 = vpop.f32.mrf.mxu0
        %v815 = vadd.f32 0.0, %v814
        %816 = vmatmul.f32.gmra.mxu0 %v757
        %v817 = vpop.f32.mrf.mxu0
        %v818 = vadd.f32 0.0, %v817
        %819 = vmatmul.f32.gmra.mxu0 %v758
        %v820 = vpop.f32.mrf.mxu0
        %v821 = vadd.f32 0.0, %v820
        %822 = vmatmul.f32.gmra.mxu0 %v759
        %v823 = vpop.f32.mrf.mxu0
        %v824 = vadd.f32 0.0, %v823
        %825 = vmatmul.f32.gmra.mxu0 %v760
        %v826 = vpop.f32.mrf.mxu0
        %v827 = vadd.f32 0.0, %v826
        %828 = vmatmul.f32.gmra.mxu0 %v761
        %v829 = vpop.f32.mrf.mxu0
        %v830 = vadd.f32 0.0, %v829
        %831 = vmatmul.f32.gmra.mxu0 %v762
        %v832 = vpop.f32.mrf.mxu0
        %v833 = vadd.f32 0.0, %v832
        %834 = vmatmul.f32.gmra.mxu0 %v763
        %v835 = vpop.f32.mrf.mxu0
        %v836 = vadd.f32 0.0, %v835
        %837 = vmatmul.f32.gmra.mxu0 %v764
        %v838 = vpop.f32.mrf.mxu0
        %v839 = vadd.f32 0.0, %v838
        %840 = vmatmul.f32.gmra.mxu0 %v765
        %v841 = vpop.f32.mrf.mxu0
        %v842 = vadd.f32 0.0, %v841
        %843 = vmatmul.f32.gmra.mxu0 %v766
        %v844 = vpop.f32.mrf.mxu0
        %v845 = vadd.f32 0.0, %v844
        %846 = vmatmul.f32.gmra.mxu0 %v767
        %v847 = vpop.f32.mrf.mxu0
        %v848 = vadd.f32 0.0, %v847
        %849 = vmatmul.f32.gmra.mxu0 %v768
        %v850 = vpop.f32.mrf.mxu0
        %v851 = vadd.f32 0.0, %v850
        %852 = vmatmul.f32.gmra.mxu0 %v769
        %v853 = vpop.f32.mrf.mxu0
        %v854 = vadd.f32 0.0, %v853
        %855 = vmatmul.f32.gmra.mxu0 %v770
        %v856 = vpop.f32.mrf.mxu0
        %v857 = vadd.f32 0.0, %v856
        %858 = vdwg.mxu0
        %v859 = vadd.f32 %v735, %v806
        %v860 = vadd.f32 %v736, %v809
        %v861 = vadd.f32 %v737, %v812
        %v862 = vadd.f32 %v738, %v815
        %v863 = vadd.f32 %v739, %v818
        %v864 = vadd.f32 %v740, %v821
        %v865 = vadd.f32 %v741, %v824
        %v866 = vadd.f32 %v742, %v827
        %v867 = vadd.f32 %v743, %v830
        %v868 = vadd.f32 %v744, %v833
        %v869 = vadd.f32 %v745, %v836
        %v870 = vadd.f32 %v746, %v839
        %v871 = vadd.f32 %v747, %v842
        %v872 = vadd.f32 %v748, %v845
        %v873 = vadd.f32 %v749, %v848
        %v874 = vadd.f32 %v750, %v851
        %v875 = vadd.f32 %v751, %v854
        %v876 = vadd.f32 %v752, %v857
        %v877 = vld [vmem:[%s628 + $0x2] sm:$0xff]
        %v878 = vld [vmem:[%s628 + $0xa] sm:$0xff]
        %v879 = vld [vmem:[%s628 + $0x12] sm:$0xff]
        %v880 = vld [vmem:[%s628 + $0x22] sm:$0xff]
        %v881 = vld [vmem:[%s628 + $0x2a] sm:$0xff]
        %v882 = vld [vmem:[%s628 + $0x32] sm:$0xff]
        %v883 = vld [vmem:[%s628 + $0x42] sm:$0xff]
        %v884 = vld [vmem:[%s628 + $0x4a] sm:$0xff]
        %v885 = vld [vmem:[%s628 + $0x52] sm:$0xff]
        %v886 = vld [vmem:[%s628 + $0x62] sm:$0xff]
        %v887 = vld [vmem:[%s628 + $0x6a] sm:$0xff]
        %v888 = vld [vmem:[%s628 + $0x72] sm:$0xff]
        %v889 = vld [vmem:[%s628 + $0x82] sm:$0xff]
        %v890 = vld [vmem:[%s628 + $0x8a] sm:$0xff]
        %v891 = vld [vmem:[%s628 + $0x92] sm:$0xff]
        %v892 = vld [vmem:[%s628 + $0xa2] sm:$0xff]
        %v893 = vld [vmem:[%s628 + $0xaa] sm:$0xff]
        %v894 = vld [vmem:[%s628 + $0xb2] sm:$0xff]
        %s895 = scalar_lea.vmem [#allocation4], 640
        %v896 = vld [vmem:[%s895] sm:$0xff]
        %v897 = vld [vmem:[%s895 + $0x8] sm:$0xff]
        %v898 = vld [vmem:[%s895 + $0x10] sm:$0xff]
        %v899 = vld [vmem:[%s895 + $0x18] sm:$0xff]
        %v900 = vld [vmem:[%s895 + $0x20] sm:$0xff]
        %v901 = vld [vmem:[%s895 + $0x28] sm:$0xff]
        %v902 = vld [vmem:[%s895 + $0x30] sm:$0xff]
        %v903 = vld [vmem:[%s895 + $0x38] sm:$0xff]
        %v904 = vld [vmem:[%s895 + $0x40] sm:$0xff]
        %v905 = vld [vmem:[%s895 + $0x48] sm:$0xff]
        %v906 = vld [vmem:[%s895 + $0x50] sm:$0xff]
        %v907 = vld [vmem:[%s895 + $0x58] sm:$0xff]
        %v908 = vld [vmem:[%s895 + $0x60] sm:$0xff]
        %v909 = vld [vmem:[%s895 + $0x68] sm:$0xff]
        %v910 = vld [vmem:[%s895 + $0x70] sm:$0xff]
        %v911 = vld [vmem:[%s895 + $0x78] sm:$0xff]
        %912 = vmatpush.msra.mxu0 %v911
        %913 = vmatpush.msra.mxu0 %v910
        %914 = vmatpush.msra.mxu0 %v909
        %915 = vmatpush.msra.mxu0 %v908
        %916 = vmatpush.msra.mxu0 %v907
        %917 = vmatpush.msra.mxu0 %v906
        %918 = vmatpush.msra.mxu0 %v905
        %919 = vmatpush.msra.mxu0 %v904
        %920 = vmatpush.msra.mxu0 %v903
        %921 = vmatpush.msra.mxu0 %v902
        %922 = vmatpush.msra.mxu0 %v901
        %923 = vmatpush.msra.mxu0 %v900
        %924 = vmatpush.msra.mxu0 %v899
        %925 = vmatpush.msra.mxu0 %v898
        %926 = vmatpush.msra.mxu0 %v897
        %927 = vmatpush.msra.mxu0 %v896
        %928 = vmatmul.f32.gmra.mxu0 %v877
        %v929 = vpop.f32.mrf.mxu0
        %v930 = vadd.f32 0.0, %v929
        %931 = vmatmul.f32.gmra.mxu0 %v878
        %v932 = vpop.f32.mrf.mxu0
        %v933 = vadd.f32 0.0, %v932
        %934 = vmatmul.f32.gmra.mxu0 %v879
        %v935 = vpop.f32.mrf.mxu0
        %v936 = vadd.f32 0.0, %v935
        %937 = vmatmul.f32.gmra.mxu0 %v880
        %v938 = vpop.f32.mrf.mxu0
        %v939 = vadd.f32 0.0, %v938
        %940 = vmatmul.f32.gmra.mxu0 %v881
        %v941 = vpop.f32.mrf.mxu0
        %v942 = vadd.f32 0.0, %v941
        %943 = vmatmul.f32.gmra.mxu0 %v882
        %v944 = vpop.f32.mrf.mxu0
        %v945 = vadd.f32 0.0, %v944
        %946 = vmatmul.f32.gmra.mxu0 %v883
        %v947 = vpop.f32.mrf.mxu0
        %v948 = vadd.f32 0.0, %v947
        %949 = vmatmul.f32.gmra.mxu0 %v884
        %v950 = vpop.f32.mrf.mxu0
        %v951 = vadd.f32 0.0, %v950
        %952 = vmatmul.f32.gmra.mxu0 %v885
        %v953 = vpop.f32.mrf.mxu0
        %v954 = vadd.f32 0.0, %v953
        %955 = vmatmul.f32.gmra.mxu0 %v886
        %v956 = vpop.f32.mrf.mxu0
        %v957 = vadd.f32 0.0, %v956
        %958 = vmatmul.f32.gmra.mxu0 %v887
        %v959 = vpop.f32.mrf.mxu0
        %v960 = vadd.f32 0.0, %v959
        %961 = vmatmul.f32.gmra.mxu0 %v888
        %v962 = vpop.f32.mrf.mxu0
        %v963 = vadd.f32 0.0, %v962
        %964 = vmatmul.f32.gmra.mxu0 %v889
        %v965 = vpop.f32.mrf.mxu0
        %v966 = vadd.f32 0.0, %v965
        %967 = vmatmul.f32.gmra.mxu0 %v890
        %v968 = vpop.f32.mrf.mxu0
        %v969 = vadd.f32 0.0, %v968
        %970 = vmatmul.f32.gmra.mxu0 %v891
        %v971 = vpop.f32.mrf.mxu0
        %v972 = vadd.f32 0.0, %v971
        %973 = vmatmul.f32.gmra.mxu0 %v892
        %v974 = vpop.f32.mrf.mxu0
        %v975 = vadd.f32 0.0, %v974
        %976 = vmatmul.f32.gmra.mxu0 %v893
        %v977 = vpop.f32.mrf.mxu0
        %v978 = vadd.f32 0.0, %v977
        %979 = vmatmul.f32.gmra.mxu0 %v894
        %v980 = vpop.f32.mrf.mxu0
        %v981 = vadd.f32 0.0, %v980
        %982 = vdwg.mxu0
        %v983 = vadd.f32 %v859, %v930
        %v984 = vadd.f32 %v860, %v933
        %v985 = vadd.f32 %v861, %v936
        %v986 = vadd.f32 %v862, %v939
        %v987 = vadd.f32 %v863, %v942
        %v988 = vadd.f32 %v864, %v945
        %v989 = vadd.f32 %v865, %v948
        %v990 = vadd.f32 %v866, %v951
        %v991 = vadd.f32 %v867, %v954
        %v992 = vadd.f32 %v868, %v957
        %v993 = vadd.f32 %v869, %v960
        %v994 = vadd.f32 %v870, %v963
        %v995 = vadd.f32 %v871, %v966
        %v996 = vadd.f32 %v872, %v969
        %v997 = vadd.f32 %v873, %v972
        %v998 = vadd.f32 %v874, %v975
        %v999 = vadd.f32 %v875, %v978
        %v1000 = vadd.f32 %v876, %v981
        %s1001 = scalar_lea.vmem %s287, 64 [#allocation2]
        %v1002 = vld [vmem:[%s1001] sm:$0xff]
        %v1003 = vld [vmem:[%s1001 + $0x8] sm:$0xff]
        %v1004 = vld [vmem:[%s1001 + $0x10] sm:$0xff]
        %v1005 = vld [vmem:[%s1001 + $0x20] sm:$0xff]
        %v1006 = vld [vmem:[%s1001 + $0x28] sm:$0xff]
        %v1007 = vld [vmem:[%s1001 + $0x30] sm:$0xff]
        %v1008 = vld [vmem:[%s1001 + $0x40] sm:$0xff]
        %v1009 = vld [vmem:[%s1001 + $0x48] sm:$0xff]
        %v1010 = vld [vmem:[%s1001 + $0x50] sm:$0xff]
        %v1011 = vld [vmem:[%s1001 + $0x60] sm:$0xff]
        %v1012 = vld [vmem:[%s1001 + $0x68] sm:$0xff]
        %v1013 = vld [vmem:[%s1001 + $0x70] sm:$0xff]
        %v1014 = vld [vmem:[%s1001 + $0x80] sm:$0xff]
        %v1015 = vld [vmem:[%s1001 + $0x88] sm:$0xff]
        %v1016 = vld [vmem:[%s1001 + $0x90] sm:$0xff]
        %v1017 = vld [vmem:[%s1001 + $0xa0] sm:$0xff]
        %v1018 = vld [vmem:[%s1001 + $0xa8] sm:$0xff]
        %v1019 = vld [vmem:[%s1001 + $0xb0] sm:$0xff]
        %s1020 = scalar_lea.vmem [#allocation4], 768
        %v1021 = vld [vmem:[%s1020] sm:$0xff]
        %v1022 = vld [vmem:[%s1020 + $0x8] sm:$0xff]
        %v1023 = vld [vmem:[%s1020 + $0x10] sm:$0xff]
        %v1024 = vld [vmem:[%s1020 + $0x18] sm:$0xff]
        %v1025 = vld [vmem:[%s1020 + $0x20] sm:$0xff]
        %v1026 = vld [vmem:[%s1020 + $0x28] sm:$0xff]
        %v1027 = vld [vmem:[%s1020 + $0x30] sm:$0xff]
        %v1028 = vld [vmem:[%s1020 + $0x38] sm:$0xff]
        %v1029 = vld [vmem:[%s1020 + $0x40] sm:$0xff]
        %v1030 = vld [vmem:[%s1020 + $0x48] sm:$0xff]
        %v1031 = vld [vmem:[%s1020 + $0x50] sm:$0xff]
        %v1032 = vld [vmem:[%s1020 + $0x58] sm:$0xff]
        %v1033 = vld [vmem:[%s1020 + $0x60] sm:$0xff]
        %v1034 = vld [vmem:[%s1020 + $0x68] sm:$0xff]
        %v1035 = vld [vmem:[%s1020 + $0x70] sm:$0xff]
        %v1036 = vld [vmem:[%s1020 + $0x78] sm:$0xff]
        %1037 = vmatpush.msra.mxu0 %v1036
        %1038 = vmatpush.msra.mxu0 %v1035
        %1039 = vmatpush.msra.mxu0 %v1034
        %1040 = vmatpush.msra.mxu0 %v1033
        %1041 = vmatpush.msra.mxu0 %v1032
        %1042 = vmatpush.msra.mxu0 %v1031
        %1043 = vmatpush.msra.mxu0 %v1030
        %1044 = vmatpush.msra.mxu0 %v1029
        %1045 = vmatpush.msra.mxu0 %v1028
        %1046 = vmatpush.msra.mxu0 %v1027
        %1047 = vmatpush.msra.mxu0 %v1026
        %1048 = vmatpush.msra.mxu0 %v1025
        %1049 = vmatpush.msra.mxu0 %v1024
        %1050 = vmatpush.msra.mxu0 %v1023
        %1051 = vmatpush.msra.mxu0 %v1022
        %1052 = vmatpush.msra.mxu0 %v1021
        %1053 = vmatmul.f32.gmra.mxu0 %v1002
        %v1054 = vpop.f32.mrf.mxu0
        %v1055 = vadd.f32 0.0, %v1054
        %1056 = vmatmul.f32.gmra.mxu0 %v1003
        %v1057 = vpop.f32.mrf.mxu0
        %v1058 = vadd.f32 0.0, %v1057
        %1059 = vmatmul.f32.gmra.mxu0 %v1004
        %v1060 = vpop.f32.mrf.mxu0
        %v1061 = vadd.f32 0.0, %v1060
        %1062 = vmatmul.f32.gmra.mxu0 %v1005
        %v1063 = vpop.f32.mrf.mxu0
        %v1064 = vadd.f32 0.0, %v1063
        %1065 = vmatmul.f32.gmra.mxu0 %v1006
        %v1066 = vpop.f32.mrf.mxu0
        %v1067 = vadd.f32 0.0, %v1066
        %1068 = vmatmul.f32.gmra.mxu0 %v1007
        %v1069 = vpop.f32.mrf.mxu0
        %v1070 = vadd.f32 0.0, %v1069
        %1071 = vmatmul.f32.gmra.mxu0 %v1008
        %v1072 = vpop.f32.mrf.mxu0
        %v1073 = vadd.f32 0.0, %v1072
        %1074 = vmatmul.f32.gmra.mxu0 %v1009
        %v1075 = vpop.f32.mrf.mxu0
        %v1076 = vadd.f32 0.0, %v1075
        %1077 = vmatmul.f32.gmra.mxu0 %v1010
        %v1078 = vpop.f32.mrf.mxu0
        %v1079 = vadd.f32 0.0, %v1078
        %1080 = vmatmul.f32.gmra.mxu0 %v1011
        %v1081 = vpop.f32.mrf.mxu0
        %v1082 = vadd.f32 0.0, %v1081
        %1083 = vmatmul.f32.gmra.mxu0 %v1012
        %v1084 = vpop.f32.mrf.mxu0
        %v1085 = vadd.f32 0.0, %v1084
        %1086 = vmatmul.f32.gmra.mxu0 %v1013
        %v1087 = vpop.f32.mrf.mxu0
        %v1088 = vadd.f32 0.0, %v1087
        %1089 = vmatmul.f32.gmra.mxu0 %v1014
        %v1090 = vpop.f32.mrf.mxu0
        %v1091 = vadd.f32 0.0, %v1090
        %1092 = vmatmul.f32.gmra.mxu0 %v1015
        %v1093 = vpop.f32.mrf.mxu0
        %v1094 = vadd.f32 0.0, %v1093
        %1095 = vmatmul.f32.gmra.mxu0 %v1016
        %v1096 = vpop.f32.mrf.mxu0
        %v1097 = vadd.f32 0.0, %v1096
        %1098 = vmatmul.f32.gmra.mxu0 %v1017
        %v1099 = vpop.f32.mrf.mxu0
        %v1100 = vadd.f32 0.0, %v1099
        %1101 = vmatmul.f32.gmra.mxu0 %v1018
        %v1102 = vpop.f32.mrf.mxu0
        %v1103 = vadd.f32 0.0, %v1102
        %1104 = vmatmul.f32.gmra.mxu0 %v1019
        %v1105 = vpop.f32.mrf.mxu0
        %v1106 = vadd.f32 0.0, %v1105
        %1107 = vdwg.mxu0
        %v1108 = vadd.f32 %v983, %v1055
        %v1109 = vadd.f32 %v984, %v1058
        %v1110 = vadd.f32 %v985, %v1061
        %v1111 = vadd.f32 %v986, %v1064
        %v1112 = vadd.f32 %v987, %v1067
        %v1113 = vadd.f32 %v988, %v1070
        %v1114 = vadd.f32 %v989, %v1073
        %v1115 = vadd.f32 %v990, %v1076
        %v1116 = vadd.f32 %v991, %v1079
        %v1117 = vadd.f32 %v992, %v1082
        %v1118 = vadd.f32 %v993, %v1085
        %v1119 = vadd.f32 %v994, %v1088
        %v1120 = vadd.f32 %v995, %v1091
        %v1121 = vadd.f32 %v996, %v1094
        %v1122 = vadd.f32 %v997, %v1097
        %v1123 = vadd.f32 %v998, %v1100
        %v1124 = vadd.f32 %v999, %v1103
        %v1125 = vadd.f32 %v1000, %v1106
        %v1126 = vld [vmem:[%s1001 + $0x1] sm:$0xff]
        %v1127 = vld [vmem:[%s1001 + $0x9] sm:$0xff]
        %v1128 = vld [vmem:[%s1001 + $0x11] sm:$0xff]
        %v1129 = vld [vmem:[%s1001 + $0x21] sm:$0xff]
        %v1130 = vld [vmem:[%s1001 + $0x29] sm:$0xff]
        %v1131 = vld [vmem:[%s1001 + $0x31] sm:$0xff]
        %v1132 = vld [vmem:[%s1001 + $0x41] sm:$0xff]
        %v1133 = vld [vmem:[%s1001 + $0x49] sm:$0xff]
        %v1134 = vld [vmem:[%s1001 + $0x51] sm:$0xff]
        %v1135 = vld [vmem:[%s1001 + $0x61] sm:$0xff]
        %v1136 = vld [vmem:[%s1001 + $0x69] sm:$0xff]
        %v1137 = vld [vmem:[%s1001 + $0x71] sm:$0xff]
        %v1138 = vld [vmem:[%s1001 + $0x81] sm:$0xff]
        %v1139 = vld [vmem:[%s1001 + $0x89] sm:$0xff]
        %v1140 = vld [vmem:[%s1001 + $0x91] sm:$0xff]
        %v1141 = vld [vmem:[%s1001 + $0xa1] sm:$0xff]
        %v1142 = vld [vmem:[%s1001 + $0xa9] sm:$0xff]
        %v1143 = vld [vmem:[%s1001 + $0xb1] sm:$0xff]
        %s1144 = scalar_lea.vmem [#allocation4], 896
        %v1145 = vld [vmem:[%s1144] sm:$0xff]
        %v1146 = vld [vmem:[%s1144 + $0x8] sm:$0xff]
        %v1147 = vld [vmem:[%s1144 + $0x10] sm:$0xff]
        %v1148 = vld [vmem:[%s1144 + $0x18] sm:$0xff]
        %v1149 = vld [vmem:[%s1144 + $0x20] sm:$0xff]
        %v1150 = vld [vmem:[%s1144 + $0x28] sm:$0xff]
        %v1151 = vld [vmem:[%s1144 + $0x30] sm:$0xff]
        %v1152 = vld [vmem:[%s1144 + $0x38] sm:$0xff]
        %v1153 = vld [vmem:[%s1144 + $0x40] sm:$0xff]
        %v1154 = vld [vmem:[%s1144 + $0x48] sm:$0xff]
        %v1155 = vld [vmem:[%s1144 + $0x50] sm:$0xff]
        %v1156 = vld [vmem:[%s1144 + $0x58] sm:$0xff]
        %v1157 = vld [vmem:[%s1144 + $0x60] sm:$0xff]
        %v1158 = vld [vmem:[%s1144 + $0x68] sm:$0xff]
        %v1159 = vld [vmem:[%s1144 + $0x70] sm:$0xff]
        %v1160 = vld [vmem:[%s1144 + $0x78] sm:$0xff]
        %1161 = vmatpush.msra.mxu0 %v1160
        %1162 = vmatpush.msra.mxu0 %v1159
        %1163 = vmatpush.msra.mxu0 %v1158
        %1164 = vmatpush.msra.mxu0 %v1157
        %1165 = vmatpush.msra.mxu0 %v1156
        %1166 = vmatpush.msra.mxu0 %v1155
        %1167 = vmatpush.msra.mxu0 %v1154
        %1168 = vmatpush.msra.mxu0 %v1153
        %1169 = vmatpush.msra.mxu0 %v1152
        %1170 = vmatpush.msra.mxu0 %v1151
        %1171 = vmatpush.msra.mxu0 %v1150
        %1172 = vmatpush.msra.mxu0 %v1149
        %1173 = vmatpush.msra.mxu0 %v1148
        %1174 = vmatpush.msra.mxu0 %v1147
        %1175 = vmatpush.msra.mxu0 %v1146
        %1176 = vmatpush.msra.mxu0 %v1145
        %1177 = vmatmul.f32.gmra.mxu0 %v1126
        %v1178 = vpop.f32.mrf.mxu0
        %v1179 = vadd.f32 0.0, %v1178
        %1180 = vmatmul.f32.gmra.mxu0 %v1127
        %v1181 = vpop.f32.mrf.mxu0
        %v1182 = vadd.f32 0.0, %v1181
        %1183 = vmatmul.f32.gmra.mxu0 %v1128
        %v1184 = vpop.f32.mrf.mxu0
        %v1185 = vadd.f32 0.0, %v1184
        %1186 = vmatmul.f32.gmra.mxu0 %v1129
        %v1187 = vpop.f32.mrf.mxu0
        %v1188 = vadd.f32 0.0, %v1187
        %1189 = vmatmul.f32.gmra.mxu0 %v1130
        %v1190 = vpop.f32.mrf.mxu0
        %v1191 = vadd.f32 0.0, %v1190
        %1192 = vmatmul.f32.gmra.mxu0 %v1131
        %v1193 = vpop.f32.mrf.mxu0
        %v1194 = vadd.f32 0.0, %v1193
        %1195 = vmatmul.f32.gmra.mxu0 %v1132
        %v1196 = vpop.f32.mrf.mxu0
        %v1197 = vadd.f32 0.0, %v1196
        %1198 = vmatmul.f32.gmra.mxu0 %v1133
        %v1199 = vpop.f32.mrf.mxu0
        %v1200 = vadd.f32 0.0, %v1199
        %1201 = vmatmul.f32.gmra.mxu0 %v1134
        %v1202 = vpop.f32.mrf.mxu0
        %v1203 = vadd.f32 0.0, %v1202
        %1204 = vmatmul.f32.gmra.mxu0 %v1135
        %v1205 = vpop.f32.mrf.mxu0
        %v1206 = vadd.f32 0.0, %v1205
        %1207 = vmatmul.f32.gmra.mxu0 %v1136
        %v1208 = vpop.f32.mrf.mxu0
        %v1209 = vadd.f32 0.0, %v1208
        %1210 = vmatmul.f32.gmra.mxu0 %v1137
        %v1211 = vpop.f32.mrf.mxu0
        %v1212 = vadd.f32 0.0, %v1211
        %1213 = vmatmul.f32.gmra.mxu0 %v1138
        %v1214 = vpop.f32.mrf.mxu0
        %v1215 = vadd.f32 0.0, %v1214
        %1216 = vmatmul.f32.gmra.mxu0 %v1139
        %v1217 = vpop.f32.mrf.mxu0
        %v1218 = vadd.f32 0.0, %v1217
        %1219 = vmatmul.f32.gmra.mxu0 %v1140
        %v1220 = vpop.f32.mrf.mxu0
        %v1221 = vadd.f32 0.0, %v1220
        %1222 = vmatmul.f32.gmra.mxu0 %v1141
        %v1223 = vpop.f32.mrf.mxu0
        %v1224 = vadd.f32 0.0, %v1223
        %1225 = vmatmul.f32.gmra.mxu0 %v1142
        %v1226 = vpop.f32.mrf.mxu0
        %v1227 = vadd.f32 0.0, %v1226
        %1228 = vmatmul.f32.gmra.mxu0 %v1143
        %v1229 = vpop.f32.mrf.mxu0
        %v1230 = vadd.f32 0.0, %v1229
        %1231 = vdwg.mxu0
        %v1232 = vadd.f32 %v1108, %v1179
        %v1233 = vadd.f32 %v1109, %v1182
        %v1234 = vadd.f32 %v1110, %v1185
        %v1235 = vadd.f32 %v1111, %v1188
        %v1236 = vadd.f32 %v1112, %v1191
        %v1237 = vadd.f32 %v1113, %v1194
        %v1238 = vadd.f32 %v1114, %v1197
        %v1239 = vadd.f32 %v1115, %v1200
        %v1240 = vadd.f32 %v1116, %v1203
        %v1241 = vadd.f32 %v1117, %v1206
        %v1242 = vadd.f32 %v1118, %v1209
        %v1243 = vadd.f32 %v1119, %v1212
        %v1244 = vadd.f32 %v1120, %v1215
        %v1245 = vadd.f32 %v1121, %v1218
        %v1246 = vadd.f32 %v1122, %v1221
        %v1247 = vadd.f32 %v1123, %v1224
        %v1248 = vadd.f32 %v1124, %v1227
        %v1249 = vadd.f32 %v1125, %v1230
        %v1250 = vld [vmem:[%s1001 + $0x2] sm:$0xff]
        %v1251 = vld [vmem:[%s1001 + $0xa] sm:$0xff]
        %v1252 = vld [vmem:[%s1001 + $0x12] sm:$0xff]
        %v1253 = vld [vmem:[%s1001 + $0x22] sm:$0xff]
        %v1254 = vld [vmem:[%s1001 + $0x2a] sm:$0xff]
        %v1255 = vld [vmem:[%s1001 + $0x32] sm:$0xff]
        %v1256 = vld [vmem:[%s1001 + $0x42] sm:$0xff]
        %v1257 = vld [vmem:[%s1001 + $0x4a] sm:$0xff]
        %v1258 = vld [vmem:[%s1001 + $0x52] sm:$0xff]
        %v1259 = vld [vmem:[%s1001 + $0x62] sm:$0xff]
        %v1260 = vld [vmem:[%s1001 + $0x6a] sm:$0xff]
        %v1261 = vld [vmem:[%s1001 + $0x72] sm:$0xff]
        %v1262 = vld [vmem:[%s1001 + $0x82] sm:$0xff]
        %v1263 = vld [vmem:[%s1001 + $0x8a] sm:$0xff]
        %v1264 = vld [vmem:[%s1001 + $0x92] sm:$0xff]
        %v1265 = vld [vmem:[%s1001 + $0xa2] sm:$0xff]
        %v1266 = vld [vmem:[%s1001 + $0xaa] sm:$0xff]
        %v1267 = vld [vmem:[%s1001 + $0xb2] sm:$0xff]
        %s1268 = scalar_lea.vmem [#allocation4], 1024
        %v1269 = vld [vmem:[%s1268] sm:$0xff]
        %v1270 = vld [vmem:[%s1268 + $0x8] sm:$0xff]
        %v1271 = vld [vmem:[%s1268 + $0x10] sm:$0xff]
        %v1272 = vld [vmem:[%s1268 + $0x18] sm:$0xff]
        %v1273 = vld [vmem:[%s1268 + $0x20] sm:$0xff]
        %v1274 = vld [vmem:[%s1268 + $0x28] sm:$0xff]
        %v1275 = vld [vmem:[%s1268 + $0x30] sm:$0xff]
        %v1276 = vld [vmem:[%s1268 + $0x38] sm:$0xff]
        %v1277 = vld [vmem:[%s1268 + $0x40] sm:$0xff]
        %v1278 = vld [vmem:[%s1268 + $0x48] sm:$0xff]
        %v1279 = vld [vmem:[%s1268 + $0x50] sm:$0xff]
        %v1280 = vld [vmem:[%s1268 + $0x58] sm:$0xff]
        %v1281 = vld [vmem:[%s1268 + $0x60] sm:$0xff]
        %v1282 = vld [vmem:[%s1268 + $0x68] sm:$0xff]
        %v1283 = vld [vmem:[%s1268 + $0x70] sm:$0xff]
        %v1284 = vld [vmem:[%s1268 + $0x78] sm:$0xff]
        %1285 = vmatpush.msra.mxu0 %v1284
        %1286 = vmatpush.msra.mxu0 %v1283
        %1287 = vmatpush.msra.mxu0 %v1282
        %1288 = vmatpush.msra.mxu0 %v1281
        %1289 = vmatpush.msra.mxu0 %v1280
        %1290 = vmatpush.msra.mxu0 %v1279
        %1291 = vmatpush.msra.mxu0 %v1278
        %1292 = vmatpush.msra.mxu0 %v1277
        %1293 = vmatpush.msra.mxu0 %v1276
        %1294 = vmatpush.msra.mxu0 %v1275
        %1295 = vmatpush.msra.mxu0 %v1274
        %1296 = vmatpush.msra.mxu0 %v1273
        %1297 = vmatpush.msra.mxu0 %v1272
        %1298 = vmatpush.msra.mxu0 %v1271
        %1299 = vmatpush.msra.mxu0 %v1270
        %1300 = vmatpush.msra.mxu0 %v1269
        %1301 = vmatmul.f32.gmra.mxu0 %v1250
        %v1302 = vpop.f32.mrf.mxu0
        %v1303 = vadd.f32 0.0, %v1302
        %1304 = vmatmul.f32.gmra.mxu0 %v1251
        %v1305 = vpop.f32.mrf.mxu0
        %v1306 = vadd.f32 0.0, %v1305
        %1307 = vmatmul.f32.gmra.mxu0 %v1252
        %v1308 = vpop.f32.mrf.mxu0
        %v1309 = vadd.f32 0.0, %v1308
        %1310 = vmatmul.f32.gmra.mxu0 %v1253
        %v1311 = vpop.f32.mrf.mxu0
        %v1312 = vadd.f32 0.0, %v1311
        %1313 = vmatmul.f32.gmra.mxu0 %v1254
        %v1314 = vpop.f32.mrf.mxu0
        %v1315 = vadd.f32 0.0, %v1314
        %1316 = vmatmul.f32.gmra.mxu0 %v1255
        %v1317 = vpop.f32.mrf.mxu0
        %v1318 = vadd.f32 0.0, %v1317
        %1319 = vmatmul.f32.gmra.mxu0 %v1256
        %v1320 = vpop.f32.mrf.mxu0
        %v1321 = vadd.f32 0.0, %v1320
        %1322 = vmatmul.f32.gmra.mxu0 %v1257
        %v1323 = vpop.f32.mrf.mxu0
        %v1324 = vadd.f32 0.0, %v1323
        %1325 = vmatmul.f32.gmra.mxu0 %v1258
        %v1326 = vpop.f32.mrf.mxu0
        %v1327 = vadd.f32 0.0, %v1326
        %1328 = vmatmul.f32.gmra.mxu0 %v1259
        %v1329 = vpop.f32.mrf.mxu0
        %v1330 = vadd.f32 0.0, %v1329
        %1331 = vmatmul.f32.gmra.mxu0 %v1260
        %v1332 = vpop.f32.mrf.mxu0
        %v1333 = vadd.f32 0.0, %v1332
        %1334 = vmatmul.f32.gmra.mxu0 %v1261
        %v1335 = vpop.f32.mrf.mxu0
        %v1336 = vadd.f32 0.0, %v1335
        %1337 = vmatmul.f32.gmra.mxu0 %v1262
        %v1338 = vpop.f32.mrf.mxu0
        %v1339 = vadd.f32 0.0, %v1338
        %1340 = vmatmul.f32.gmra.mxu0 %v1263
        %v1341 = vpop.f32.mrf.mxu0
        %v1342 = vadd.f32 0.0, %v1341
        %1343 = vmatmul.f32.gmra.mxu0 %v1264
        %v1344 = vpop.f32.mrf.mxu0
        %v1345 = vadd.f32 0.0, %v1344
        %1346 = vmatmul.f32.gmra.mxu0 %v1265
        %v1347 = vpop.f32.mrf.mxu0
        %v1348 = vadd.f32 0.0, %v1347
        %1349 = vmatmul.f32.gmra.mxu0 %v1266
        %v1350 = vpop.f32.mrf.mxu0
        %v1351 = vadd.f32 0.0, %v1350
        %1352 = vmatmul.f32.gmra.mxu0 %v1267
        %v1353 = vpop.f32.mrf.mxu0
        %v1354 = vadd.f32 0.0, %v1353
        %1355 = vdwg.mxu0
        %v1356 = vadd.f32 %v1232, %v1303
        %v1357 = vadd.f32 %v1233, %v1306
        %v1358 = vadd.f32 %v1234, %v1309
        %v1359 = vadd.f32 %v1235, %v1312
        %v1360 = vadd.f32 %v1236, %v1315
        %v1361 = vadd.f32 %v1237, %v1318
        %v1362 = vadd.f32 %v1238, %v1321
        %v1363 = vadd.f32 %v1239, %v1324
        %v1364 = vadd.f32 %v1240, %v1327
        %v1365 = vadd.f32 %v1241, %v1330
        %v1366 = vadd.f32 %v1242, %v1333
        %v1367 = vadd.f32 %v1243, %v1336
        %v1368 = vadd.f32 %v1244, %v1339
        %v1369 = vadd.f32 %v1245, %v1342
        %v1370 = vadd.f32 %v1246, %v1345
        %v1371 = vadd.f32 %v1247, %v1348
        %v1372 = vadd.f32 %v1248, %v1351
        %v1373 = vadd.f32 %v1249, %v1354
        %v1374 = vld [vmem:[%s2] sm:$0x1]
        %v1376 = vperm.slane %v1374, 0
        %v1378 = vadd.f32 %v1356, %v1376
        %v1379 = vadd.f32 %v1357, %v1376
        %v1380 = vadd.f32 %v1358, %v1376
        %v1381 = vadd.f32 %v1359, %v1376
        %v1382 = vadd.f32 %v1360, %v1376
        %v1383 = vadd.f32 %v1361, %v1376
        %v1384 = vadd.f32 %v1362, %v1376
        %v1385 = vadd.f32 %v1363, %v1376
        %v1386 = vadd.f32 %v1364, %v1376
        %v1387 = vadd.f32 %v1365, %v1376
        %v1388 = vadd.f32 %v1366, %v1376
        %v1389 = vadd.f32 %v1367, %v1376
        %v1390 = vadd.f32 %v1368, %v1376
        %v1391 = vadd.f32 %v1369, %v1376
        %v1392 = vadd.f32 %v1370, %v1376
        %v1393 = vadd.f32 %v1371, %v1376
        %v1394 = vadd.f32 %v1372, %v1376
        %v1395 = vadd.f32 %v1373, %v1376
        %v1396 = vmax.f32 %v1378, 0.0
        %v1397 = vmax.f32 %v1379, 0.0
        %v1398 = vmax.f32 %v1380, 0.0
        %v1399 = vmax.f32 %v1381, 0.0
        %v1400 = vmax.f32 %v1382, 0.0
        %v1401 = vmax.f32 %v1383, 0.0
        %v1402 = vmax.f32 %v1384, 0.0
        %v1403 = vmax.f32 %v1385, 0.0
        %v1404 = vmax.f32 %v1386, 0.0
        %v1405 = vmax.f32 %v1387, 0.0
        %v1406 = vmax.f32 %v1388, 0.0
        %v1407 = vmax.f32 %v1389, 0.0
        %v1408 = vmax.f32 %v1390, 0.0
        %v1409 = vmax.f32 %v1391, 0.0
        %v1410 = vmax.f32 %v1392, 0.0
        %v1411 = vmax.f32 %v1393, 0.0
        %v1412 = vmax.f32 %v1394, 0.0
        %v1413 = vmax.f32 %v1395, 0.0
        %v1414 = vld [vmem:[#allocation7] sm:$0xff]
        %v1415 = vld [vmem:[#allocation7 + $0x8] sm:$0xff]
        %v1416 = vld [vmem:[#allocation7 + $0x10] sm:$0xff]
        %v1417 = vld [vmem:[#allocation7 + $0x18] sm:$0xff]
        %v1418 = vld [vmem:[#allocation7 + $0x20] sm:$0xff]
        %v1419 = vld [vmem:[#allocation7 + $0x28] sm:$0xff]
        %v1420 = vld [vmem:[#allocation7 + $0x30] sm:$0xff]
        %v1421 = vld [vmem:[#allocation7 + $0x38] sm:$0xff]
        %v1422 = vld [vmem:[#allocation7 + $0x40] sm:$0xff]
        %v1423 = vld [vmem:[#allocation7 + $0x48] sm:$0xff]
        %v1424 = vld [vmem:[#allocation7 + $0x50] sm:$0xff]
        %v1425 = vld [vmem:[#allocation7 + $0x58] sm:$0xff]
        %v1426 = vld [vmem:[#allocation7 + $0x60] sm:$0xff]
        %v1427 = vld [vmem:[#allocation7 + $0x68] sm:$0xff]
        %v1428 = vld [vmem:[#allocation7 + $0x70] sm:$0xff]
        %v1429 = vld [vmem:[#allocation7 + $0x78] sm:$0xff]
        %vm1442 = vcmask 1046528
        %v1443 = vrot.slane %v1396, 1
        %v1444 = vrot.slane %v1397, 1
        %v1445 = vsel %vm1442, %v1443, %v1444
        %v1446 = vrot.slane %v1398, 1
        %v1447 = vsel %vm1442, %v1444, %v1446
        %v1448 = vrot.slane %v1399, 1
        %v1449 = vrot.slane %v1400, 1
        %v1450 = vsel %vm1442, %v1448, %v1449
        %v1451 = vrot.slane %v1401, 1
        %v1452 = vsel %vm1442, %v1449, %v1451
        %v1453 = vrot.slane %v1402, 1
        %v1454 = vrot.slane %v1403, 1
        %v1455 = vsel %vm1442, %v1453, %v1454
        %v1456 = vrot.slane %v1404, 1
        %v1457 = vsel %vm1442, %v1454, %v1456
        %v1458 = vrot.slane %v1405, 1
        %v1459 = vrot.slane %v1406, 1
        %v1460 = vsel %vm1442, %v1458, %v1459
        %v1461 = vrot.slane %v1407, 1
        %v1462 = vsel %vm1442, %v1459, %v1461
        %s1471 = scalar_lea.vmem [#allocation7], 128
        %v1472 = vld [vmem:[%s1471] sm:$0xff]
        %v1473 = vld [vmem:[%s1471 + $0x8] sm:$0xff]
        %v1474 = vld [vmem:[%s1471 + $0x10] sm:$0xff]
        %v1475 = vld [vmem:[%s1471 + $0x18] sm:$0xff]
        %v1476 = vld [vmem:[%s1471 + $0x20] sm:$0xff]
        %v1477 = vld [vmem:[%s1471 + $0x28] sm:$0xff]
        %v1478 = vld [vmem:[%s1471 + $0x30] sm:$0xff]
        %v1479 = vld [vmem:[%s1471 + $0x38] sm:$0xff]
        %v1480 = vld [vmem:[%s1471 + $0x40] sm:$0xff]
        %v1481 = vld [vmem:[%s1471 + $0x48] sm:$0xff]
        %v1482 = vld [vmem:[%s1471 + $0x50] sm:$0xff]
        %v1483 = vld [vmem:[%s1471 + $0x58] sm:$0xff]
        %v1484 = vld [vmem:[%s1471 + $0x60] sm:$0xff]
        %v1485 = vld [vmem:[%s1471 + $0x68] sm:$0xff]
        %v1486 = vld [vmem:[%s1471 + $0x70] sm:$0xff]
        %v1487 = vld [vmem:[%s1471 + $0x78] sm:$0xff]
        %1488 = vmatpush.msra.mxu0 %v1487
        %1489 = vmatpush.msra.mxu0 %v1486
        %1490 = vmatpush.msra.mxu0 %v1485
        %1491 = vmatpush.msra.mxu0 %v1484
        %1492 = vmatpush.msra.mxu0 %v1483
        %1493 = vmatpush.msra.mxu0 %v1482
        %1494 = vmatpush.msra.mxu0 %v1481
        %1495 = vmatpush.msra.mxu0 %v1480
        %1496 = vmatpush.msra.mxu0 %v1479
        %1497 = vmatpush.msra.mxu0 %v1478
        %1498 = vmatpush.msra.mxu0 %v1477
        %1499 = vmatpush.msra.mxu0 %v1476
        %1500 = vmatpush.msra.mxu0 %v1475
        %1501 = vmatpush.msra.mxu0 %v1474
        %1502 = vmatpush.msra.mxu0 %v1473
        %1503 = vmatpush.msra.mxu0 %v1472
        %1504 = vmatmul.f32.gmra.mxu0 %v1445
        %v1505 = vpop.f32.mrf.mxu0
        %v1506 = vadd.f32 0.0, %v1505
        %1507 = vmatmul.f32.gmra.mxu0 %v1447
        %v1508 = vpop.f32.mrf.mxu0
        %v1509 = vadd.f32 0.0, %v1508
        %1510 = vmatmul.f32.gmra.mxu0 %v1450
        %v1511 = vpop.f32.mrf.mxu0
        %v1512 = vadd.f32 0.0, %v1511
        %1513 = vmatmul.f32.gmra.mxu0 %v1452
        %v1514 = vpop.f32.mrf.mxu0
        %v1515 = vadd.f32 0.0, %v1514
        %1516 = vmatmul.f32.gmra.mxu0 %v1455
        %v1517 = vpop.f32.mrf.mxu0
        %v1518 = vadd.f32 0.0, %v1517
        %1519 = vmatmul.f32.gmra.mxu0 %v1457
        %v1520 = vpop.f32.mrf.mxu0
        %v1521 = vadd.f32 0.0, %v1520
        %1522 = vmatmul.f32.gmra.mxu0 %v1460
        %v1523 = vpop.f32.mrf.mxu0
        %v1524 = vadd.f32 0.0, %v1523
        %1525 = vmatmul.f32.gmra.mxu0 %v1462
        %v1526 = vpop.f32.mrf.mxu0
        %v1527 = vadd.f32 0.0, %v1526
        %1528 = vdwg.mxu0
        %1529 = vmatpush.msra.mxu0 %v1429
        %1530 = vmatpush.msra.mxu0 %v1428
        %1531 = vmatpush.msra.mxu0 %v1427
        %1532 = vmatpush.msra.mxu0 %v1426
        %1533 = vmatpush.msra.mxu0 %v1425
        %1534 = vmatpush.msra.mxu0 %v1424
        %1535 = vmatpush.msra.mxu0 %v1423
        %1536 = vmatpush.msra.mxu0 %v1422
        %1537 = vmatpush.msra.mxu0 %v1421
        %1538 = vmatpush.msra.mxu0 %v1420
        %1539 = vmatpush.msra.mxu0 %v1419
        %1540 = vmatpush.msra.mxu0 %v1418
        %1541 = vmatpush.msra.mxu0 %v1417
        %1542 = vmatpush.msra.mxu0 %v1416
        %1543 = vmatpush.msra.mxu0 %v1415
        %1544 = vmatpush.msra.mxu0 %v1414
        %1545 = vmatmul.f32.gmra.mxu0 %v1396
        %v1546 = vpop.f32.mrf.mxu0
        %v1547 = vadd.f32 %v1506, %v1546
        %1548 = vmatmul.f32.gmra.mxu0 %v1397
        %v1549 = vpop.f32.mrf.mxu0
        %v1550 = vadd.f32 %v1509, %v1549
        %1551 = vmatmul.f32.gmra.mxu0 %v1399
        %v1552 = vpop.f32.mrf.mxu0
        %v1553 = vadd.f32 %v1512, %v1552
        %1554 = vmatmul.f32.gmra.mxu0 %v1400
        %v1555 = vpop.f32.mrf.mxu0
        %v1556 = vadd.f32 %v1515, %v1555
        %1557 = vmatmul.f32.gmra.mxu0 %v1402
        %v1558 = vpop.f32.mrf.mxu0
        %v1559 = vadd.f32 %v1518, %v1558
        %1560 = vmatmul.f32.gmra.mxu0 %v1403
        %v1561 = vpop.f32.mrf.mxu0
        %v1562 = vadd.f32 %v1521, %v1561
        %1563 = vmatmul.f32.gmra.mxu0 %v1405
        %v1564 = vpop.f32.mrf.mxu0
        %v1565 = vadd.f32 %v1524, %v1564
        %1566 = vmatmul.f32.gmra.mxu0 %v1406
        %v1567 = vpop.f32.mrf.mxu0
        %v1568 = vadd.f32 %v1527, %v1567
        %1569 = vdwg.mxu0
        %vm1570 = vcmask 1045504
        %v1571 = vrot.slane %v1396, 2
        %v1572 = vrot.slane %v1397, 2
        %v1573 = vsel %vm1570, %v1571, %v1572
        %v1574 = vrot.slane %v1398, 2
        %v1575 = vsel %vm1570, %v1572, %v1574
        %v1576 = vrot.slane %v1399, 2
        %v1577 = vrot.slane %v1400, 2
        %v1578 = vsel %vm1570, %v1576, %v1577
        %v1579 = vrot.slane %v1401, 2
        %v1580 = vsel %vm1570, %v1577, %v1579
        %v1581 = vrot.slane %v1402, 2
        %v1582 = vrot.slane %v1403, 2
        %v1583 = vsel %vm1570, %v1581, %v1582
        %v1584 = vrot.slane %v1404, 2
        %v1585 = vsel %vm1570, %v1582, %v1584
        %v1586 = vrot.slane %v1405, 2
        %v1587 = vrot.slane %v1406, 2
        %v1588 = vsel %vm1570, %v1586, %v1587
        %v1589 = vrot.slane %v1407, 2
        %v1590 = vsel %vm1570, %v1587, %v1589
        %s1599 = scalar_lea.vmem [#allocation7], 256
        %v1600 = vld [vmem:[%s1599] sm:$0xff]
        %v1601 = vld [vmem:[%s1599 + $0x8] sm:$0xff]
        %v1602 = vld [vmem:[%s1599 + $0x10] sm:$0xff]
        %v1603 = vld [vmem:[%s1599 + $0x18] sm:$0xff]
        %v1604 = vld [vmem:[%s1599 + $0x20] sm:$0xff]
        %v1605 = vld [vmem:[%s1599 + $0x28] sm:$0xff]
        %v1606 = vld [vmem:[%s1599 + $0x30] sm:$0xff]
        %v1607 = vld [vmem:[%s1599 + $0x38] sm:$0xff]
        %v1608 = vld [vmem:[%s1599 + $0x40] sm:$0xff]
        %v1609 = vld [vmem:[%s1599 + $0x48] sm:$0xff]
        %v1610 = vld [vmem:[%s1599 + $0x50] sm:$0xff]
        %v1611 = vld [vmem:[%s1599 + $0x58] sm:$0xff]
        %v1612 = vld [vmem:[%s1599 + $0x60] sm:$0xff]
        %v1613 = vld [vmem:[%s1599 + $0x68] sm:$0xff]
        %v1614 = vld [vmem:[%s1599 + $0x70] sm:$0xff]
        %v1615 = vld [vmem:[%s1599 + $0x78] sm:$0xff]
        %1616 = vmatpush.msra.mxu0 %v1615
        %1617 = vmatpush.msra.mxu0 %v1614
        %1618 = vmatpush.msra.mxu0 %v1613
        %1619 = vmatpush.msra.mxu0 %v1612
        %1620 = vmatpush.msra.mxu0 %v1611
        %1621 = vmatpush.msra.mxu0 %v1610
        %1622 = vmatpush.msra.mxu0 %v1609
        %1623 = vmatpush.msra.mxu0 %v1608
        %1624 = vmatpush.msra.mxu0 %v1607
        %1625 = vmatpush.msra.mxu0 %v1606
        %1626 = vmatpush.msra.mxu0 %v1605
        %1627 = vmatpush.msra.mxu0 %v1604
        %1628 = vmatpush.msra.mxu0 %v1603
        %1629 = vmatpush.msra.mxu0 %v1602
        %1630 = vmatpush.msra.mxu0 %v1601
        %1631 = vmatpush.msra.mxu0 %v1600
        %1632 = vmatmul.f32.gmra.mxu0 %v1573
        %v1633 = vpop.f32.mrf.mxu0
        %v1634 = vadd.f32 0.0, %v1633
        %1635 = vmatmul.f32.gmra.mxu0 %v1575
        %v1636 = vpop.f32.mrf.mxu0
        %v1637 = vadd.f32 0.0, %v1636
        %1638 = vmatmul.f32.gmra.mxu0 %v1578
        %v1639 = vpop.f32.mrf.mxu0
        %v1640 = vadd.f32 0.0, %v1639
        %1641 = vmatmul.f32.gmra.mxu0 %v1580
        %v1642 = vpop.f32.mrf.mxu0
        %v1643 = vadd.f32 0.0, %v1642
        %1644 = vmatmul.f32.gmra.mxu0 %v1583
        %v1645 = vpop.f32.mrf.mxu0
        %v1646 = vadd.f32 0.0, %v1645
        %1647 = vmatmul.f32.gmra.mxu0 %v1585
        %v1648 = vpop.f32.mrf.mxu0
        %v1649 = vadd.f32 0.0, %v1648
        %1650 = vmatmul.f32.gmra.mxu0 %v1588
        %v1651 = vpop.f32.mrf.mxu0
        %v1652 = vadd.f32 0.0, %v1651
        %1653 = vmatmul.f32.gmra.mxu0 %v1590
        %v1654 = vpop.f32.mrf.mxu0
        %v1655 = vadd.f32 0.0, %v1654
        %1656 = vdwg.mxu0
        %v1657 = vadd.f32 %v1547, %v1634
        %v1658 = vadd.f32 %v1550, %v1637
        %v1659 = vadd.f32 %v1553, %v1640
        %v1660 = vadd.f32 %v1556, %v1643
        %v1661 = vadd.f32 %v1559, %v1646
        %v1662 = vadd.f32 %v1562, %v1649
        %v1663 = vadd.f32 %v1565, %v1652
        %v1664 = vadd.f32 %v1568, %v1655
        %s1665 = scalar_lea.vmem [#allocation7], 384
        %v1666 = vld [vmem:[%s1665] sm:$0xff]
        %v1667 = vld [vmem:[%s1665 + $0x8] sm:$0xff]
        %v1668 = vld [vmem:[%s1665 + $0x10] sm:$0xff]
        %v1669 = vld [vmem:[%s1665 + $0x18] sm:$0xff]
        %v1670 = vld [vmem:[%s1665 + $0x20] sm:$0xff]
        %v1671 = vld [vmem:[%s1665 + $0x28] sm:$0xff]
        %v1672 = vld [vmem:[%s1665 + $0x30] sm:$0xff]
        %v1673 = vld [vmem:[%s1665 + $0x38] sm:$0xff]
        %v1674 = vld [vmem:[%s1665 + $0x40] sm:$0xff]
        %v1675 = vld [vmem:[%s1665 + $0x48] sm:$0xff]
        %v1676 = vld [vmem:[%s1665 + $0x50] sm:$0xff]
        %v1677 = vld [vmem:[%s1665 + $0x58] sm:$0xff]
        %v1678 = vld [vmem:[%s1665 + $0x60] sm:$0xff]
        %v1679 = vld [vmem:[%s1665 + $0x68] sm:$0xff]
        %v1680 = vld [vmem:[%s1665 + $0x70] sm:$0xff]
        %v1681 = vld [vmem:[%s1665 + $0x78] sm:$0xff]
        %1682 = vmatpush.msra.mxu0 %v1681
        %1683 = vmatpush.msra.mxu0 %v1680
        %1684 = vmatpush.msra.mxu0 %v1679
        %1685 = vmatpush.msra.mxu0 %v1678
        %1686 = vmatpush.msra.mxu0 %v1677
        %1687 = vmatpush.msra.mxu0 %v1676
        %1688 = vmatpush.msra.mxu0 %v1675
        %1689 = vmatpush.msra.mxu0 %v1674
        %1690 = vmatpush.msra.mxu0 %v1673
        %1691 = vmatpush.msra.mxu0 %v1672
        %1692 = vmatpush.msra.mxu0 %v1671
        %1693 = vmatpush.msra.mxu0 %v1670
        %1694 = vmatpush.msra.mxu0 %v1669
        %1695 = vmatpush.msra.mxu0 %v1668
        %1696 = vmatpush.msra.mxu0 %v1667
        %1697 = vmatpush.msra.mxu0 %v1666
        %1698 = vmatmul.f32.gmra.mxu0 %v1399
        %v1699 = vpop.f32.mrf.mxu0
        %v1700 = vadd.f32 0.0, %v1699
        %1701 = vmatmul.f32.gmra.mxu0 %v1400
        %v1702 = vpop.f32.mrf.mxu0
        %v1703 = vadd.f32 0.0, %v1702
        %1704 = vmatmul.f32.gmra.mxu0 %v1402
        %v1705 = vpop.f32.mrf.mxu0
        %v1706 = vadd.f32 0.0, %v1705
        %1707 = vmatmul.f32.gmra.mxu0 %v1403
        %v1708 = vpop.f32.mrf.mxu0
        %v1709 = vadd.f32 0.0, %v1708
        %1710 = vmatmul.f32.gmra.mxu0 %v1405
        %v1711 = vpop.f32.mrf.mxu0
        %v1712 = vadd.f32 0.0, %v1711
        %1713 = vmatmul.f32.gmra.mxu0 %v1406
        %v1714 = vpop.f32.mrf.mxu0
        %v1715 = vadd.f32 0.0, %v1714
        %1716 = vmatmul.f32.gmra.mxu0 %v1408
        %v1717 = vpop.f32.mrf.mxu0
        %v1718 = vadd.f32 0.0, %v1717
        %1719 = vmatmul.f32.gmra.mxu0 %v1409
        %v1720 = vpop.f32.mrf.mxu0
        %v1721 = vadd.f32 0.0, %v1720
        %1722 = vdwg.mxu0
        %v1723 = vadd.f32 %v1657, %v1700
        %v1724 = vadd.f32 %v1658, %v1703
        %v1725 = vadd.f32 %v1659, %v1706
        %v1726 = vadd.f32 %v1660, %v1709
        %v1727 = vadd.f32 %v1661, %v1712
        %v1728 = vadd.f32 %v1662, %v1715
        %v1729 = vadd.f32 %v1663, %v1718
        %v1730 = vadd.f32 %v1664, %v1721
        %v1734 = vrot.slane %v1408, 1
        %v1735 = vrot.slane %v1409, 1
        %v1736 = vsel %vm1442, %v1734, %v1735
        %v1737 = vrot.slane %v1410, 1
        %v1738 = vsel %vm1442, %v1735, %v1737
        %s1741 = scalar_lea.vmem [#allocation7], 512
        %v1742 = vld [vmem:[%s1741] sm:$0xff]
        %v1743 = vld [vmem:[%s1741 + $0x8] sm:$0xff]
        %v1744 = vld [vmem:[%s1741 + $0x10] sm:$0xff]
        %v1745 = vld [vmem:[%s1741 + $0x18] sm:$0xff]
        %v1746 = vld [vmem:[%s1741 + $0x20] sm:$0xff]
        %v1747 = vld [vmem:[%s1741 + $0x28] sm:$0xff]
        %v1748 = vld [vmem:[%s1741 + $0x30] sm:$0xff]
        %v1749 = vld [vmem:[%s1741 + $0x38] sm:$0xff]
        %v1750 = vld [vmem:[%s1741 + $0x40] sm:$0xff]
        %v1751 = vld [vmem:[%s1741 + $0x48] sm:$0xff]
        %v1752 = vld [vmem:[%s1741 + $0x50] sm:$0xff]
        %v1753 = vld [vmem:[%s1741 + $0x58] sm:$0xff]
        %v1754 = vld [vmem:[%s1741 + $0x60] sm:$0xff]
        %v1755 = vld [vmem:[%s1741 + $0x68] sm:$0xff]
        %v1756 = vld [vmem:[%s1741 + $0x70] sm:$0xff]
        %v1757 = vld [vmem:[%s1741 + $0x78] sm:$0xff]
        %1758 = vmatpush.msra.mxu0 %v1757
        %1759 = vmatpush.msra.mxu0 %v1756
        %1760 = vmatpush.msra.mxu0 %v1755
        %1761 = vmatpush.msra.mxu0 %v1754
        %1762 = vmatpush.msra.mxu0 %v1753
        %1763 = vmatpush.msra.mxu0 %v1752
        %1764 = vmatpush.msra.mxu0 %v1751
        %1765 = vmatpush.msra.mxu0 %v1750
        %1766 = vmatpush.msra.mxu0 %v1749
        %1767 = vmatpush.msra.mxu0 %v1748
        %1768 = vmatpush.msra.mxu0 %v1747
        %1769 = vmatpush.msra.mxu0 %v1746
        %1770 = vmatpush.msra.mxu0 %v1745
        %1771 = vmatpush.msra.mxu0 %v1744
        %1772 = vmatpush.msra.mxu0 %v1743
        %1773 = vmatpush.msra.mxu0 %v1742
        %1774 = vmatmul.f32.gmra.mxu0 %v1450
        %v1775 = vpop.f32.mrf.mxu0
        %v1776 = vadd.f32 0.0, %v1775
        %1777 = vmatmul.f32.gmra.mxu0 %v1452
        %v1778 = vpop.f32.mrf.mxu0
        %v1779 = vadd.f32 0.0, %v1778
        %1780 = vmatmul.f32.gmra.mxu0 %v1455
        %v1781 = vpop.f32.mrf.mxu0
        %v1782 = vadd.f32 0.0, %v1781
        %1783 = vmatmul.f32.gmra.mxu0 %v1457
        %v1784 = vpop.f32.mrf.mxu0
        %v1785 = vadd.f32 0.0, %v1784
        %1786 = vmatmul.f32.gmra.mxu0 %v1460
        %v1787 = vpop.f32.mrf.mxu0
        %v1788 = vadd.f32 0.0, %v1787
        %1789 = vmatmul.f32.gmra.mxu0 %v1462
        %v1790 = vpop.f32.mrf.mxu0
        %v1791 = vadd.f32 0.0, %v1790
        %1792 = vmatmul.f32.gmra.mxu0 %v1736
        %v1793 = vpop.f32.mrf.mxu0
        %v1794 = vadd.f32 0.0, %v1793
        %1795 = vmatmul.f32.gmra.mxu0 %v1738
        %v1796 = vpop.f32.mrf.mxu0
        %v1797 = vadd.f32 0.0, %v1796
        %1798 = vdwg.mxu0
        %v1799 = vadd.f32 %v1723, %v1776
        %v1800 = vadd.f32 %v1724, %v1779
        %v1801 = vadd.f32 %v1725, %v1782
        %v1802 = vadd.f32 %v1726, %v1785
        %v1803 = vadd.f32 %v1727, %v1788
        %v1804 = vadd.f32 %v1728, %v1791
        %v1805 = vadd.f32 %v1729, %v1794
        %v1806 = vadd.f32 %v1730, %v1797
        %v1807 = vrot.slane %v1408, 2
        %v1808 = vrot.slane %v1409, 2
        %v1809 = vsel %vm1570, %v1807, %v1808
        %v1810 = vrot.slane %v1410, 2
        %v1811 = vsel %vm1570, %v1808, %v1810
        %s1814 = scalar_lea.vmem [#allocation7], 640
        %v1815 = vld [vmem:[%s1814] sm:$0xff]
        %v1816 = vld [vmem:[%s1814 + $0x8] sm:$0xff]
        %v1817 = vld [vmem:[%s1814 + $0x10] sm:$0xff]
        %v1818 = vld [vmem:[%s1814 + $0x18] sm:$0xff]
        %v1819 = vld [vmem:[%s1814 + $0x20] sm:$0xff]
        %v1820 = vld [vmem:[%s1814 + $0x28] sm:$0xff]
        %v1821 = vld [vmem:[%s1814 + $0x30] sm:$0xff]
        %v1822 = vld [vmem:[%s1814 + $0x38] sm:$0xff]
        %v1823 = vld [vmem:[%s1814 + $0x40] sm:$0xff]
        %v1824 = vld [vmem:[%s1814 + $0x48] sm:$0xff]
        %v1825 = vld [vmem:[%s1814 + $0x50] sm:$0xff]
        %v1826 = vld [vmem:[%s1814 + $0x58] sm:$0xff]
        %v1827 = vld [vmem:[%s1814 + $0x60] sm:$0xff]
        %v1828 = vld [vmem:[%s1814 + $0x68] sm:$0xff]
        %v1829 = vld [vmem:[%s1814 + $0x70] sm:$0xff]
        %v1830 = vld [vmem:[%s1814 + $0x78] sm:$0xff]
        %1831 = vmatpush.msra.mxu0 %v1830
        %1832 = vmatpush.msra.mxu0 %v1829
        %1833 = vmatpush.msra.mxu0 %v1828
        %1834 = vmatpush.msra.mxu0 %v1827
        %1835 = vmatpush.msra.mxu0 %v1826
        %1836 = vmatpush.msra.mxu0 %v1825
        %1837 = vmatpush.msra.mxu0 %v1824
        %1838 = vmatpush.msra.mxu0 %v1823
        %1839 = vmatpush.msra.mxu0 %v1822
        %1840 = vmatpush.msra.mxu0 %v1821
        %1841 = vmatpush.msra.mxu0 %v1820
        %1842 = vmatpush.msra.mxu0 %v1819
        %1843 = vmatpush.msra.mxu0 %v1818
        %1844 = vmatpush.msra.mxu0 %v1817
        %1845 = vmatpush.msra.mxu0 %v1816
        %1846 = vmatpush.msra.mxu0 %v1815
        %1847 = vmatmul.f32.gmra.mxu0 %v1578
        %v1848 = vpop.f32.mrf.mxu0
        %v1849 = vadd.f32 0.0, %v1848
        %1850 = vmatmul.f32.gmra.mxu0 %v1580
        %v1851 = vpop.f32.mrf.mxu0
        %v1852 = vadd.f32 0.0, %v1851
        %1853 = vmatmul.f32.gmra.mxu0 %v1583
        %v1854 = vpop.f32.mrf.mxu0
        %v1855 = vadd.f32 0.0, %v1854
        %1856 = vmatmul.f32.gmra.mxu0 %v1585
        %v1857 = vpop.f32.mrf.mxu0
        %v1858 = vadd.f32 0.0, %v1857
        %1859 = vmatmul.f32.gmra.mxu0 %v1588
        %v1860 = vpop.f32.mrf.mxu0
        %v1861 = vadd.f32 0.0, %v1860
        %1862 = vmatmul.f32.gmra.mxu0 %v1590
        %v1863 = vpop.f32.mrf.mxu0
        %v1864 = vadd.f32 0.0, %v1863
        %1865 = vmatmul.f32.gmra.mxu0 %v1809
        %v1866 = vpop.f32.mrf.mxu0
        %v1867 = vadd.f32 0.0, %v1866
        %1868 = vmatmul.f32.gmra.mxu0 %v1811
        %v1869 = vpop.f32.mrf.mxu0
        %v1870 = vadd.f32 0.0, %v1869
        %1871 = vdwg.mxu0
        %v1872 = vadd.f32 %v1799, %v1849
        %v1873 = vadd.f32 %v1800, %v1852
        %v1874 = vadd.f32 %v1801, %v1855
        %v1875 = vadd.f32 %v1802, %v1858
        %v1876 = vadd.f32 %v1803, %v1861
        %v1877 = vadd.f32 %v1804, %v1864
        %v1878 = vadd.f32 %v1805, %v1867
        %v1879 = vadd.f32 %v1806, %v1870
        %s1880 = scalar_lea.vmem [#allocation7], 768
        %v1881 = vld [vmem:[%s1880] sm:$0xff]
        %v1882 = vld [vmem:[%s1880 + $0x8] sm:$0xff]
        %v1883 = vld [vmem:[%s1880 + $0x10] sm:$0xff]
        %v1884 = vld [vmem:[%s1880 + $0x18] sm:$0xff]
        %v1885 = vld [vmem:[%s1880 + $0x20] sm:$0xff]
        %v1886 = vld [vmem:[%s1880 + $0x28] sm:$0xff]
        %v1887 = vld [vmem:[%s1880 + $0x30] sm:$0xff]
        %v1888 = vld [vmem:[%s1880 + $0x38] sm:$0xff]
        %v1889 = vld [vmem:[%s1880 + $0x40] sm:$0xff]
        %v1890 = vld [vmem:[%s1880 + $0x48] sm:$0xff]
        %v1891 = vld [vmem:[%s1880 + $0x50] sm:$0xff]
        %v1892 = vld [vmem:[%s1880 + $0x58] sm:$0xff]
        %v1893 = vld [vmem:[%s1880 + $0x60] sm:$0xff]
        %v1894 = vld [vmem:[%s1880 + $0x68] sm:$0xff]
        %v1895 = vld [vmem:[%s1880 + $0x70] sm:$0xff]
        %v1896 = vld [vmem:[%s1880 + $0x78] sm:$0xff]
        %1897 = vmatpush.msra.mxu0 %v1896
        %1898 = vmatpush.msra.mxu0 %v1895
        %1899 = vmatpush.msra.mxu0 %v1894
        %1900 = vmatpush.msra.mxu0 %v1893
        %1901 = vmatpush.msra.mxu0 %v1892
        %1902 = vmatpush.msra.mxu0 %v1891
        %1903 = vmatpush.msra.mxu0 %v1890
        %1904 = vmatpush.msra.mxu0 %v1889
        %1905 = vmatpush.msra.mxu0 %v1888
        %1906 = vmatpush.msra.mxu0 %v1887
        %1907 = vmatpush.msra.mxu0 %v1886
        %1908 = vmatpush.msra.mxu0 %v1885
        %1909 = vmatpush.msra.mxu0 %v1884
        %1910 = vmatpush.msra.mxu0 %v1883
        %1911 = vmatpush.msra.mxu0 %v1882
        %1912 = vmatpush.msra.mxu0 %v1881
        %1913 = vmatmul.f32.gmra.mxu0 %v1402
        %v1914 = vpop.f32.mrf.mxu0
        %v1915 = vadd.f32 0.0, %v1914
        %1916 = vmatmul.f32.gmra.mxu0 %v1403
        %v1917 = vpop.f32.mrf.mxu0
        %v1918 = vadd.f32 0.0, %v1917
        %1919 = vmatmul.f32.gmra.mxu0 %v1405
        %v1920 = vpop.f32.mrf.mxu0
        %v1921 = vadd.f32 0.0, %v1920
        %1922 = vmatmul.f32.gmra.mxu0 %v1406
        %v1923 = vpop.f32.mrf.mxu0
        %v1924 = vadd.f32 0.0, %v1923
        %1925 = vmatmul.f32.gmra.mxu0 %v1408
        %v1926 = vpop.f32.mrf.mxu0
        %v1927 = vadd.f32 0.0, %v1926
        %1928 = vmatmul.f32.gmra.mxu0 %v1409
        %v1929 = vpop.f32.mrf.mxu0
        %v1930 = vadd.f32 0.0, %v1929
        %1931 = vmatmul.f32.gmra.mxu0 %v1411
        %v1932 = vpop.f32.mrf.mxu0
        %v1933 = vadd.f32 0.0, %v1932
        %1934 = vmatmul.f32.gmra.mxu0 %v1412
        %v1935 = vpop.f32.mrf.mxu0
        %v1936 = vadd.f32 0.0, %v1935
        %1937 = vdwg.mxu0
        %v1938 = vadd.f32 %v1872, %v1915
        %v1939 = vadd.f32 %v1873, %v1918
        %v1940 = vadd.f32 %v1874, %v1921
        %v1941 = vadd.f32 %v1875, %v1924
        %v1942 = vadd.f32 %v1876, %v1927
        %v1943 = vadd.f32 %v1877, %v1930
        %v1944 = vadd.f32 %v1878, %v1933
        %v1945 = vadd.f32 %v1879, %v1936
        %v1949 = vrot.slane %v1411, 1
        %v1950 = vrot.slane %v1412, 1
        %v1951 = vsel %vm1442, %v1949, %v1950
        %v1952 = vrot.slane %v1413, 1
        %v1953 = vsel %vm1442, %v1950, %v1952
        %s1956 = scalar_lea.vmem [#allocation7], 896
        %v1957 = vld [vmem:[%s1956] sm:$0xff]
        %v1958 = vld [vmem:[%s1956 + $0x8] sm:$0xff]
        %v1959 = vld [vmem:[%s1956 + $0x10] sm:$0xff]
        %v1960 = vld [vmem:[%s1956 + $0x18] sm:$0xff]
        %v1961 = vld [vmem:[%s1956 + $0x20] sm:$0xff]
        %v1962 = vld [vmem:[%s1956 + $0x28] sm:$0xff]
        %v1963 = vld [vmem:[%s1956 + $0x30] sm:$0xff]
        %v1964 = vld [vmem:[%s1956 + $0x38] sm:$0xff]
        %v1965 = vld [vmem:[%s1956 + $0x40] sm:$0xff]
        %v1966 = vld [vmem:[%s1956 + $0x48] sm:$0xff]
        %v1967 = vld [vmem:[%s1956 + $0x50] sm:$0xff]
        %v1968 = vld [vmem:[%s1956 + $0x58] sm:$0xff]
        %v1969 = vld [vmem:[%s1956 + $0x60] sm:$0xff]
        %v1970 = vld [vmem:[%s1956 + $0x68] sm:$0xff]
        %v1971 = vld [vmem:[%s1956 + $0x70] sm:$0xff]
        %v1972 = vld [vmem:[%s1956 + $0x78] sm:$0xff]
        %1973 = vmatpush.msra.mxu0 %v1972
        %1974 = vmatpush.msra.mxu0 %v1971
        %1975 = vmatpush.msra.mxu0 %v1970
        %1976 = vmatpush.msra.mxu0 %v1969
        %1977 = vmatpush.msra.mxu0 %v1968
        %1978 = vmatpush.msra.mxu0 %v1967
        %1979 = vmatpush.msra.mxu0 %v1966
        %1980 = vmatpush.msra.mxu0 %v1965
        %1981 = vmatpush.msra.mxu0 %v1964
        %1982 = vmatpush.msra.mxu0 %v1963
        %1983 = vmatpush.msra.mxu0 %v1962
        %1984 = vmatpush.msra.mxu0 %v1961
        %1985 = vmatpush.msra.mxu0 %v1960
        %1986 = vmatpush.msra.mxu0 %v1959
        %1987 = vmatpush.msra.mxu0 %v1958
        %1988 = vmatpush.msra.mxu0 %v1957
        %1989 = vmatmul.f32.gmra.mxu0 %v1455
        %v1990 = vpop.f32.mrf.mxu0
        %v1991 = vadd.f32 0.0, %v1990
        %1992 = vmatmul.f32.gmra.mxu0 %v1457
        %v1993 = vpop.f32.mrf.mxu0
        %v1994 = vadd.f32 0.0, %v1993
        %1995 = vmatmul.f32.gmra.mxu0 %v1460
        %v1996 = vpop.f32.mrf.mxu0
        %v1997 = vadd.f32 0.0, %v1996
        %1998 = vmatmul.f32.gmra.mxu0 %v1462
        %v1999 = vpop.f32.mrf.mxu0
        %v2000 = vadd.f32 0.0, %v1999
        %2001 = vmatmul.f32.gmra.mxu0 %v1736
        %v2002 = vpop.f32.mrf.mxu0
        %v2003 = vadd.f32 0.0, %v2002
        %2004 = vmatmul.f32.gmra.mxu0 %v1738
        %v2005 = vpop.f32.mrf.mxu0
        %v2006 = vadd.f32 0.0, %v2005
        %2007 = vmatmul.f32.gmra.mxu0 %v1951
        %v2008 = vpop.f32.mrf.mxu0
        %v2009 = vadd.f32 0.0, %v2008
        %2010 = vmatmul.f32.gmra.mxu0 %v1953
        %v2011 = vpop.f32.mrf.mxu0
        %v2012 = vadd.f32 0.0, %v2011
        %2013 = vdwg.mxu0
        %v2014 = vadd.f32 %v1938, %v1991
        %v2015 = vadd.f32 %v1939, %v1994
        %v2016 = vadd.f32 %v1940, %v1997
        %v2017 = vadd.f32 %v1941, %v2000
        %v2018 = vadd.f32 %v1942, %v2003
        %v2019 = vadd.f32 %v1943, %v2006
        %v2020 = vadd.f32 %v1944, %v2009
        %v2021 = vadd.f32 %v1945, %v2012
        %v2022 = vrot.slane %v1411, 2
        %v2023 = vrot.slane %v1412, 2
        %v2024 = vsel %vm1570, %v2022, %v2023
        %v2025 = vrot.slane %v1413, 2
        %v2026 = vsel %vm1570, %v2023, %v2025
        %s2029 = scalar_lea.vmem [#allocation7], 1024
        %v2030 = vld [vmem:[%s2029] sm:$0xff]
        %v2031 = vld [vmem:[%s2029 + $0x8] sm:$0xff]
        %v2032 = vld [vmem:[%s2029 + $0x10] sm:$0xff]
        %v2033 = vld [vmem:[%s2029 + $0x18] sm:$0xff]
        %v2034 = vld [vmem:[%s2029 + $0x20] sm:$0xff]
        %v2035 = vld [vmem:[%s2029 + $0x28] sm:$0xff]
        %v2036 = vld [vmem:[%s2029 + $0x30] sm:$0xff]
        %v2037 = vld [vmem:[%s2029 + $0x38] sm:$0xff]
        %v2038 = vld [vmem:[%s2029 + $0x40] sm:$0xff]
        %v2039 = vld [vmem:[%s2029 + $0x48] sm:$0xff]
        %v2040 = vld [vmem:[%s2029 + $0x50] sm:$0xff]
        %v2041 = vld [vmem:[%s2029 + $0x58] sm:$0xff]
        %v2042 = vld [vmem:[%s2029 + $0x60] sm:$0xff]
        %v2043 = vld [vmem:[%s2029 + $0x68] sm:$0xff]
        %v2044 = vld [vmem:[%s2029 + $0x70] sm:$0xff]
        %v2045 = vld [vmem:[%s2029 + $0x78] sm:$0xff]
        %2046 = vmatpush.msra.mxu0 %v2045
        %2047 = vmatpush.msra.mxu0 %v2044
        %2048 = vmatpush.msra.mxu0 %v2043
        %2049 = vmatpush.msra.mxu0 %v2042
        %2050 = vmatpush.msra.mxu0 %v2041
        %2051 = vmatpush.msra.mxu0 %v2040
        %2052 = vmatpush.msra.mxu0 %v2039
        %2053 = vmatpush.msra.mxu0 %v2038
        %2054 = vmatpush.msra.mxu0 %v2037
        %2055 = vmatpush.msra.mxu0 %v2036
        %2056 = vmatpush.msra.mxu0 %v2035
        %2057 = vmatpush.msra.mxu0 %v2034
        %2058 = vmatpush.msra.mxu0 %v2033
        %2059 = vmatpush.msra.mxu0 %v2032
        %2060 = vmatpush.msra.mxu0 %v2031
        %2061 = vmatpush.msra.mxu0 %v2030
        %2062 = vmatmul.f32.gmra.mxu0 %v1583
        %v2063 = vpop.f32.mrf.mxu0
        %v2064 = vadd.f32 0.0, %v2063
        %2065 = vmatmul.f32.gmra.mxu0 %v1585
        %v2066 = vpop.f32.mrf.mxu0
        %v2067 = vadd.f32 0.0, %v2066
        %2068 = vmatmul.f32.gmra.mxu0 %v1588
        %v2069 = vpop.f32.mrf.mxu0
        %v2070 = vadd.f32 0.0, %v2069
        %2071 = vmatmul.f32.gmra.mxu0 %v1590
        %v2072 = vpop.f32.mrf.mxu0
        %v2073 = vadd.f32 0.0, %v2072
        %2074 = vmatmul.f32.gmra.mxu0 %v1809
        %v2075 = vpop.f32.mrf.mxu0
        %v2076 = vadd.f32 0.0, %v2075
        %2077 = vmatmul.f32.gmra.mxu0 %v1811
        %v2078 = vpop.f32.mrf.mxu0
        %v2079 = vadd.f32 0.0, %v2078
        %2080 = vmatmul.f32.gmra.mxu0 %v2024
        %v2081 = vpop.f32.mrf.mxu0
        %v2082 = vadd.f32 0.0, %v2081
        %2083 = vmatmul.f32.gmra.mxu0 %v2026
        %v2084 = vpop.f32.mrf.mxu0
        %v2085 = vadd.f32 0.0, %v2084
        %2086 = vdwg.mxu0
        %v2087 = vadd.f32 %v2014, %v2064
        %v2088 = vadd.f32 %v2015, %v2067
        %v2089 = vadd.f32 %v2016, %v2070
        %v2090 = vadd.f32 %v2017, %v2073
        %v2091 = vadd.f32 %v2018, %v2076
        %v2092 = vadd.f32 %v2019, %v2079
        %v2093 = vadd.f32 %v2020, %v2082
        %v2094 = vadd.f32 %v2021, %v2085
        %v2095 = vld [vmem:[%s4] sm:$0x1]
        %v2097 = vperm.slane %v2095, 0
        %v2099 = vadd.f32 %v2087, %v2097
        %v2100 = vadd.f32 %v2088, %v2097
        %v2101 = vadd.f32 %v2089, %v2097
        %v2102 = vadd.f32 %v2090, %v2097
        %v2103 = vadd.f32 %v2091, %v2097
        %v2104 = vadd.f32 %v2092, %v2097
        %v2105 = vadd.f32 %v2093, %v2097
        %v2106 = vadd.f32 %v2094, %v2097
        %v2107 = vmax.f32 %v2099, 0.0
        %v2108 = vmax.f32 %v2100, 0.0
        %v2109 = vmax.f32 %v2101, 0.0
        %v2110 = vmax.f32 %v2102, 0.0
        %v2111 = vmax.f32 %v2103, 0.0
        %v2112 = vmax.f32 %v2104, 0.0
        %v2113 = vmax.f32 %v2105, 0.0
        %v2114 = vmax.f32 %v2106, 0.0
        %2115 = vst [vmem:[%s224] sm:$0xff] %v2107
        %2116 = vst [vmem:[%s224 + $0x8] sm:$0xff] %v2108
        %2117 = vst [vmem:[%s224 + $0x10] sm:$0xff] %v2109
        %2118 = vst [vmem:[%s224 + $0x18] sm:$0xff] %v2110
        %2119 = vst [vmem:[%s224 + $0x20] sm:$0xff] %v2111
        %2120 = vst [vmem:[%s224 + $0x28] sm:$0xff] %v2112
        %2121 = vst [vmem:[%s224 + $0x30] sm:$0xff] %v2113
        %2122 = vst [vmem:[%s224 + $0x38] sm:$0xff] %v2114
        %s2123 = sand.u32 %s127, 1
        %s2124 = scalar_lea.sflag [#allocation6], %s2123
        %s2125 = sand.u32 %s127, 1
        %s2126 = smul.addr %s2125, 64
        %s2127 = scalar_lea.vmem [#allocation9], %s2126
        // Predicated region
        $region61: #{tpu_custom_call.1} parent=35 // pred_check
          %p2128 = pneg %p137
        $region62: #{tpu_custom_call.1} parent=35 // pred_check_branch
          %2130 = sbr.rel (%p2128) target = $region64
        $region63: #{tpu_custom_call.1} parent=35 // pred_region
          %s2131 = smul.u32 4, %s26
          %2133 = vsyncadd %s2124, 0
          %s2134 = smul.addr %s2131, 2
          %s2135 = smul.addr %s25, 24
          %s2136 = sadd.s32 %s2134, %s2135
          %s2137 = smul.addr %s2136, 8
          %s2138 = scalar_lea.hbm %s5, %s2137
          %s2139 = sshll.u32 %s2127, 4
          %s2140 = int_to_ptr.vmem [resolvable:$true] %s2139
          %s2141 = sshll.u32 %s2138, 4
          %s2142 = int_to_ptr.hbm [resolvable:$true] %s2141
          %2147 = dma.vmem_to_hbm [thread:$0]  %s2140, 1024, %s2142, %s2124, 128, 128, 8
        $region64: #{tpu_custom_call.1} parent=35 // pred_fallthru
          _
      $region36: #{tpu_custom_call.1} parent=5 // pred_fallthru
        _
      %p2148 = scmp.le.s32.totalorder 2, %s16
      // Predicated region
      $region65: #{tpu_custom_call.1} parent=5 // pred_check
        %p2149 = pneg %p2148
      $region66: #{tpu_custom_call.1} parent=5 // pred_check_branch
        %2151 = sbr.rel (%p2149) target = $region68
      $region67: #{tpu_custom_call.1} parent=5 // pred_region
        %s2152 = ssub.s32 %s16, 2
        // Predicated region
        $region69: #{tpu_custom_call.1} parent=67 // pred_check
          %p2153 = pneg %p143
        $region70: #{tpu_custom_call.1} parent=67 // pred_check_branch
          %2155 = sbr.rel (%p2153) target = $region72
        $region71: #{tpu_custom_call.1} parent=67 // pred_region
          %s2156 = sand.u32 %s128, 1
          %s2157 = scalar_lea.sflag [#allocation6], %s2156
          %s2158 = sand.u32 %s128, 1
          %s2159 = smul.addr %s2158, 64
          %s2160 = scalar_lea.vmem [#allocation9], %s2159
          %2162 = dma.done %s2157, 1024
        $region72: #{tpu_custom_call.1} parent=67 // pred_fallthru
          _
      $region68: #{tpu_custom_call.1} parent=5 // pred_fallthru
        _
    $region6: #{tpu_custom_call.1} parent=1 // loop_footer
      %s20 = sadd.s32 1, %s16
    $region7: #{tpu_custom_call.1} parent=1 // loop_footer_branch
      %15 = sbr.rel target = $region3
    $region8: #{tpu_custom_call.1} parent=1 // loop_exit
      _
    %2163 = vsyncpa [#allocation5], 1
    %s2164 = scalar_lea.sflag [#allocation5], 1
    %2165 = vsyncpa %s2164, 1
    %2166 = vsyncpa [#allocation8], 1
    %2167 = vsyncpa [#allocation6], 1
    %s2168 = scalar_lea.sflag [#allocation6], 1
    %2169 = vsyncpa %s2168, 1
  %2170 = vsyncmov [#allocation3]
  %s2171 = vpop.sfrf %2170
  %p2172 = scmp.eq.s32.totalorder %s2171, 0
  %p2173 = pneg %p2172
  %2175 = shalt.err (%p2173)
  %s2176 = scalar_lea.sflag [#allocation3], 1
  %2177 = vsyncmov %s2176
  %s2178 = vpop.sfrf %2177
  %p2179 = scmp.eq.s32.totalorder %s2178, 0
  %p2180 = pneg %p2179
  %2182 = shalt.err (%p2180)

</llo_original>
